<compile_context>
chip_gen: v5e
topology: v5e:2x2
jax: 0.10.0
libtpu: 0.0.40
codegen_flags: <defaults>
</compile_context>

<pallas_src>
import functools

import jax
import jax.numpy as jnp
from jax.experimental import pallas as pl
from jax.experimental.pallas import tpu as pltpu


def _round_up(x, m):
    return ((x + m - 1) // m) * m


def _vmem_limit(est_bytes):
    # Headroom, clamped to values valid on every chip (v7x has 64 MiB VMEM).
    return int(min(max(est_bytes + (4 << 20), 32 << 20), 64 << 20))


# ---------------------------------------------------------------------------
# K1: fused LayerNorm1 + Q/K/V projections (one row tile per grid step)
# ---------------------------------------------------------------------------
def _ln_qkv_kernel(x_ref, g_ref, b_ref,
                   wq_ref, bq_ref, wk_ref, bk_ref, wv_ref, bv_ref,
                   q_ref, k_ref, v_ref, *, d_real, eps):
    x = x_ref[...].astype(jnp.float32)
    mean = jnp.sum(x, axis=-1, keepdims=True) * (1.0 / d_real)
    var = jnp.sum(x * x, axis=-1, keepdims=True) * (1.0 / d_real) - mean * mean
    inv = jax.lax.rsqrt(var + eps)
    xn = (x - mean) * inv * g_ref[...] + b_ref[...]
    xc = xn.astype(wq_ref.dtype)

    q_ref[...] = (jnp.dot(xc, wq_ref[...], preferred_element_type=jnp.float32)
                  + bq_ref[...]).astype(q_ref.dtype)
    k_ref[...] = (jnp.dot(xc, wk_ref[...], preferred_element_type=jnp.float32)
                  + bk_ref[...]).astype(k_ref.dtype)
    v_ref[...] = (jnp.dot(xc, wv_ref[...], preferred_element_type=jnp.float32)
                  + bv_ref[...]).astype(v_ref.dtype)


# ---------------------------------------------------------------------------
# K2: softmax attention, one (batch, head) pair per grid step
# ---------------------------------------------------------------------------
def _attn_kernel(q_ref, k_ref, v_ref, o_ref, *, scale):
    q = q_ref[...].astype(jnp.float32) * scale
    k = k_ref[...].astype(jnp.float32)
    s = jax.lax.dot_general(q, k, (((1,), (1,)), ((), ())),
                            preferred_element_type=jnp.float32)      # (N, N)
    s = s - jnp.max(s, axis=-1, keepdims=True)
    p = jnp.exp(s)
    l = jnp.sum(p, axis=-1, keepdims=True)
    o = jnp.dot(p.astype(v_ref.dtype), v_ref[...],
                preferred_element_type=jnp.float32)
    o_ref[...] = (o / l).astype(o_ref.dtype)


# ---------------------------------------------------------------------------
# K3: attention output projection + residual add
# ---------------------------------------------------------------------------
def _proj_residual_kernel(x_ref, a_ref, wp_ref, bp_ref, o_ref):
    y = jnp.dot(a_ref[...], wp_ref[...], preferred_element_type=jnp.float32)
    y = y + bp_ref[...] + x_ref[...].astype(jnp.float32)
    o_ref[...] = y.astype(o_ref.dtype)


def _gelu_tanh(x):
    c = 0.7978845608028654  # sqrt(2/pi)
    return 0.5 * x * (1.0 + jnp.tanh(c * (x + 0.044715 * (x * x * x))))


# ---------------------------------------------------------------------------
# K4: fused LayerNorm2 + GELU MLP + 0.2 * Adapter (ReLU MLP) + residual add
# ---------------------------------------------------------------------------
def _ln_ffn_adapter_kernel(x_ref, g_ref, b_ref,
                           wm1_ref, bm1_ref, wm2_ref, bm2_ref,
                           wa1_ref, ba1_ref, wa2_ref, ba2_ref,
                           o_ref, *, d_real, eps):
    x = x_ref[...].astype(jnp.float32)
    mean = jnp.sum(x, axis=-1, keepdims=True) * (1.0 / d_real)
    var = jnp.sum(x * x, axis=-1, keepdims=True) * (1.0 / d_real) - mean * mean
    inv = jax.lax.rsqrt(var + eps)
    xn = (x - mean) * inv * g_ref[...] + b_ref[...]
    xc = xn.astype(wm1_ref.dtype)

    # GELU MLP branch.
    h = jnp.dot(xc, wm1_ref[...], preferred_element_type=jnp.float32) + bm1_ref[...]
    h = _gelu_tanh(h)
    y = jnp.dot(h.astype(wm2_ref.dtype), wm2_ref[...],
                preferred_element_type=jnp.float32) + bm2_ref[...]

    # Adapter branch (skip_connect=False), scaled by 0.2.
    a = jnp.dot(xc, wa1_ref[...], preferred_element_type=jnp.float32) + ba1_ref[...]
    a = jnp.maximum(a, 0.0)
    a = jnp.dot(a.astype(wa2_ref.dtype), wa2_ref[...],
                preferred_element_type=jnp.float32) + ba2_ref[...]

    o_ref[...] = (x + y + 0.2 * a).astype(o_ref.dtype)


# ---------------------------------------------------------------------------
# Wrapper: full Block forward (eval mode)
# ---------------------------------------------------------------------------
def block_forward(x, params, *, num_heads, eps=1e-5, tm=256):
    """x: (B, N, D) -> (B, N, D). Weights are stored (in_dim, out_dim)."""
    B, N, D = x.shape
    assert D % num_heads == 0
    hd = D // num_heads
    scale = float(hd) ** -0.5
    Hm = params["wm1"].shape[1]
    Ha = params["wa1"].shape[1]
    M = B * N

    Dp = _round_up(D, 128)
    Hmp = _round_up(Hm, 128)
    Hap = _round_up(Ha, 128)
    tm = min(tm, _round_up(M, 8))
    Mp = _round_up(M, tm)
    grid_rows = (Mp // tm,)

    cdt = x.dtype
    xb = cdt.itemsize

    def pad_mat(w, r, c):
        return jnp.pad(w.astype(cdt), ((0, r - w.shape[0]), (0, c - w.shape[1])))

    def pad_vec(v, c):
        return jnp.pad(v.astype(jnp.float32), (0, c - v.shape[0])).reshape(1, c)

    x2d = jnp.pad(x.reshape(M, D), ((0, Mp - M), (0, Dp - D)))

    g1 = pad_vec(params["ln1_g"], Dp); b1 = pad_vec(params["ln1_b"], Dp)
    wq = pad_mat(params["wq"], Dp, Dp); bq = pad_vec(params["bq"], Dp)
    wk = pad_mat(params["wk"], Dp, Dp); bk = pad_vec(params["bk"], Dp)
    wv = pad_mat(params["wv"], Dp, Dp); bv = pad_vec(params["bv"], Dp)
    wp = pad_mat(params["wp"], Dp, Dp); bp = pad_vec(params["bp"], Dp)
    g2 = pad_vec(params["ln2_g"], Dp); b2 = pad_vec(params["ln2_b"], Dp)
    wm1 = pad_mat(params["wm1"], Dp, Hmp); bm1 = pad_vec(params["bm1"], Hmp)
    wm2 = pad_mat(params["wm2"], Hmp, Dp); bm2 = pad_vec(params["bm2"], Dp)
    wa1 = pad_mat(params["wa1"], Dp, Hap); ba1 = pad_vec(params["ba1"], Hap)
    wa2 = pad_mat(params["wa2"], Hap, Dp); ba2 = pad_vec(params["ba2"], Dp)

    row_spec = pl.BlockSpec((tm, Dp), lambda i: (i, 0))

    def const_spec(shape):
        return pl.BlockSpec(shape, lambda i: (0,) * len(shape))

    # ------------------ K1: LayerNorm1 + QKV --------------------------------
    vmem1 = (8 * tm * Dp * xb + 6 * Dp * Dp * xb + 16 * Dp * 4 + 5 * tm * Dp * 4)
    q2d, k2d, v2d = pl.pallas_call(
        functools.partial(_ln_qkv_kernel, d_real=float(D), eps=float(eps)),
        out_shape=(jax.ShapeDtypeStruct((Mp, Dp), cdt),) * 3,
        grid=grid_rows,
        in_specs=[row_spec,
                  const_spec((1, Dp)), const_spec((1, Dp)),
                  const_spec((Dp, Dp)), const_spec((1, Dp)),
                  const_spec((Dp, Dp)), const_spec((1, Dp)),
                  const_spec((Dp, Dp)), const_spec((1, Dp))],
        out_specs=(row_spec, row_spec, row_spec),
        compiler_params=pltpu.CompilerParams(
            dimension_semantics=("parallel",),
            vmem_limit_bytes=_vmem_limit(vmem1)),
        cost_estimate=pl.CostEstimate(
            flops=6 * Mp * Dp * Dp, transcendentals=0,
            bytes_accessed=4 * Mp * Dp * xb + 3 * Dp * Dp * xb),
    )(x2d, g1, b1, wq, bq, wk, bk, wv, bv)

    # ------------------ K2: per-(batch, head) attention ---------------------
    def to_heads(t2d):
        return t2d[:M, :D].reshape(B, N, num_heads, hd).transpose(0, 2, 1, 3)

    qh, kh, vh = to_heads(q2d), to_heads(k2d), to_heads(v2d)
    head_spec = pl.BlockSpec((None, None, N, hd), lambda b, h: (b, h, 0, 0))
    ao = pl.pallas_call(
        functools.partial(_attn_kernel, scale=scale),
        out_shape=jax.ShapeDtypeStruct((B, num_heads, N, hd), cdt),
        grid=(B, num_heads),
        in_specs=[head_spec, head_spec, head_spec],
        out_specs=head_spec,
        compiler_params=pltpu.CompilerParams(
            dimension_semantics=("parallel", "parallel"),
            vmem_limit_bytes=_vmem_limit(8 * N * hd * xb + 4 * N * N * 4)),
        cost_estimate=pl.CostEstimate(
            flops=4 * B * num_heads * N * N * hd,
            transcendentals=B * num_heads * N * N,
            bytes_accessed=4 * B * num_heads * N * hd * xb),
    )(qh, kh, vh)

    ao2d = jnp.pad(ao.transpose(0, 2, 1, 3).reshape(M, D),
                   ((0, Mp - M), (0, Dp - D)))

    # ------------------ K3: output projection + residual --------------------
    vmem3 = (8 * tm * Dp * xb + 2 * Dp * Dp * xb + 4 * Dp * 4 + 2 * tm * Dp * 4)
    x1_2d = pl.pallas_call(
        _proj_residual_kernel,
        out_shape=jax.ShapeDtypeStruct((Mp, Dp), cdt),
        grid=grid_rows,
        in_specs=[row_spec, row_spec, const_spec((Dp, Dp)), const_spec((1, Dp))],
        out_specs=row_spec,
        compiler_params=pltpu.CompilerParams(
            dimension_semantics=("parallel",),
            vmem_limit_bytes=_vmem_limit(vmem3)),
        cost_estimate=pl.CostEstimate(
            flops=2 * Mp * Dp * Dp, transcendentals=0,
            bytes_accessed=3 * Mp * Dp * xb + Dp * Dp * xb),
    )(x2d, ao2d, wp, bp)

    # ------------------ K4: LayerNorm2 + MLP + 0.2*Adapter + residual -------
    vmem4 = (4 * tm * Dp * xb
             + 2 * (Dp * Hmp + Hmp * Dp + Dp * Hap + Hap * Dp) * xb
             + 16 * max(Dp, Hmp) * 4
             + 2 * tm * (Dp + Hmp) * 4)
    out2d = pl.pallas_call(
        functools.partial(_ln_ffn_adapter_kernel, d_real=float(D), eps=float(eps)),
        out_shape=jax.ShapeDtypeStruct((Mp, Dp), cdt),
        grid=grid_rows,
        in_specs=[row_spec,
                  const_spec((1, Dp)), const_spec((1, Dp)),
                  const_spec((Dp, Hmp)), const_spec((1, Hmp)),
                  const_spec((Hmp, Dp)), const_spec((1, Dp)),
                  const_spec((Dp, Hap)), const_spec((1, Hap)),
                  const_spec((Hap, Dp)), const_spec((1, Dp))],
        out_specs=row_spec,
        compiler_params=pltpu.CompilerParams(
            dimension_semantics=("parallel",),
            vmem_limit_bytes=_vmem_limit(vmem4)),
        cost_estimate=pl.CostEstimate(
            flops=4 * Mp * Dp * (Hmp + Hap), transcendentals=2 * Mp * Hmp,
            bytes_accessed=2 * Mp * Dp * xb + 2 * (Dp * Hmp + Dp * Hap) * xb),
    )(x1_2d, g2, b2, wm1, bm1, wm2, bm2, wa1, ba1, wa2, ba2)

    return out2d[:M, :D].reshape(B, N, D)


# ---------------------------------------------------------------------------
# Pure-JAX reference (matches PyTorch eval-mode semantics, exact-erf GELU)
# ---------------------------------------------------------------------------
def reference_block(x, p, *, num_heads, eps=1e-5):
    B, N, D = x.shape
    hd = D // num_heads

    def ln(t, g, b):
        mu = jnp.mean(t, axis=-1, keepdims=True)
        var = jnp.var(t, axis=-1, keepdims=True)
        return (t - mu) / jnp.sqrt(var + eps) * g + b

    def heads(t):
        return t.reshape(B, N, num_heads, hd).transpose(0, 2, 1, 3)

    h1 = ln(x, p["ln1_g"], p["ln1_b"])
    q = heads(h1 @ p["wq"] + p["bq"]) * (hd ** -0.5)
    k = heads(h1 @ p["wk"] + p["bk"])
    v = heads(h1 @ p["wv"] + p["bv"])
    attn = jax.nn.softmax(jnp.einsum("bhqd,bhkd->bhqk", q, k), axis=-1)
    ao = jnp.einsum("bhqk,bhkd->bhqd", attn, v).transpose(0, 2, 1, 3).reshape(B, N, D)
    x1 = x + ao @ p["wp"] + p["bp"]

    h2 = ln(x1, p["ln2_g"], p["ln2_b"])
    mlp = jax.nn.gelu(h2 @ p["wm1"] + p["bm1"], approximate=False) @ p["wm2"] + p["bm2"]
    ad = jnp.maximum(h2 @ p["wa1"] + p["ba1"], 0.0) @ p["wa2"] + p["ba2"]
    return x1 + mlp + 0.2 * ad


if __name__ == "__main__":
    key = jax.random.PRNGKey(0)
    B, N, D = 2, 16, 64
    num_heads = 4
    Hm = int(D * 4.0)      # Block default mlp_ratio=4.0  -> 256
    Ha = int(D * 0.5)      # adapter2 mlp_ratio=0.5       -> 32

    ks = jax.random.split(key, 20)
    f32 = jnp.float32
    s = 0.05

    params = dict(
        ln1_g=1.0 + 0.1 * jax.random.normal(ks[0], (D,), f32),
        ln1_b=0.05 * jax.random.normal(ks[1], (D,), f32),
        wq=s * jax.random.normal(ks[2], (D, D), f32),
        bq=jnp.zeros((D,), f32),       # qkv_bias=False (Block default)
        wk=s * jax.random.normal(ks[3], (D, D), f32),
        bk=jnp.zeros((D,), f32),
        wv=s * jax.random.normal(ks[4], (D, D), f32),
        bv=jnp.zeros((D,), f32),
        wp=s * jax.random.normal(ks[5], (D, D), f32),
        bp=0.02 * jax.random.normal(ks[6], (D,), f32),
        ln2_g=1.0 + 0.1 * jax.random.normal(ks[7], (D,), f32),
        ln2_b=0.05 * jax.random.normal(ks[8], (D,), f32),
        wm1=s * jax.random.normal(ks[9], (D, Hm), f32),
        bm1=0.02 * jax.random.normal(ks[10], (Hm,), f32),
        wm2=s * jax.random.normal(ks[11], (Hm, D), f32),
        bm2=0.02 * jax.random.normal(ks[12], (D,), f32),
        wa1=s * jax.random.normal(ks[13], (D, Ha), f32),
        ba1=0.02 * jax.random.normal(ks[14], (Ha,), f32),
        wa2=s * jax.random.normal(ks[15], (Ha, D), f32),
        ba2=0.02 * jax.random.normal(ks[16], (D,), f32),
    )
    x = jax.random.normal(ks[17], (B, N, D), f32)

    fwd = jax.jit(functools.partial(block_forward, num_heads=num_heads))
    out = jax.block_until_ready(fwd(x, params))
    ref = reference_block(x, params, num_heads=num_heads)

    assert out.shape == (B, N, D)
    err = float(jnp.max(jnp.abs(out - ref)))
    assert jnp.allclose(out, ref, atol=2e-3, rtol=2e-3), f"mismatch vs reference (max abs err {err})"

    print("KERNEL_OK")
</pallas_src>

<mosaic_0001>
module attributes {stable_mosaic.version = 11 : i64} {
  func.func @_ln_qkv_kernel(%arg0: i32, %arg1: memref<32x128xf32, #tpu.memory_space<vmem>>, %arg2: memref<1x128xf32, #tpu.memory_space<vmem>>, %arg3: memref<1x128xf32, #tpu.memory_space<vmem>>, %arg4: memref<128x128xf32, #tpu.memory_space<vmem>>, %arg5: memref<1x128xf32, #tpu.memory_space<vmem>>, %arg6: memref<128x128xf32, #tpu.memory_space<vmem>>, %arg7: memref<1x128xf32, #tpu.memory_space<vmem>>, %arg8: memref<128x128xf32, #tpu.memory_space<vmem>>, %arg9: memref<1x128xf32, #tpu.memory_space<vmem>>, %arg10: memref<32x128xf32, #tpu.memory_space<vmem>>, %arg11: memref<32x128xf32, #tpu.memory_space<vmem>>, %arg12: memref<32x128xf32, #tpu.memory_space<vmem>>) attributes {dimension_semantics = [#tpu.dimension_semantics<parallel>], iteration_bounds = array<i64: 1>, scalar_prefetch = 0 : i64, scratch_operands = 0 : i64, tpu.core_type = #tpu.core_type<tc>, window_params = [{transform_indices = @transform_0, window_bounds = array<i64: 32, 128>}, {pipeline_mode = #tpu.pipeline_mode<synchronous>, transform_indices = @transform_1, window_bounds = array<i64: 1, 128>}, {pipeline_mode = #tpu.pipeline_mode<synchronous>, transform_indices = @transform_2, window_bounds = array<i64: 1, 128>}, {pipeline_mode = #tpu.pipeline_mode<synchronous>, transform_indices = @transform_3, window_bounds = array<i64: 128, 128>}, {pipeline_mode = #tpu.pipeline_mode<synchronous>, transform_indices = @transform_4, window_bounds = array<i64: 1, 128>}, {pipeline_mode = #tpu.pipeline_mode<synchronous>, transform_indices = @transform_5, window_bounds = array<i64: 128, 128>}, {pipeline_mode = #tpu.pipeline_mode<synchronous>, transform_indices = @transform_6, window_bounds = array<i64: 1, 128>}, {pipeline_mode = #tpu.pipeline_mode<synchronous>, transform_indices = @transform_7, window_bounds = array<i64: 128, 128>}, {pipeline_mode = #tpu.pipeline_mode<synchronous>, transform_indices = @transform_8, window_bounds = array<i64: 1, 128>}, {transform_indices = @transform_9, window_bounds = array<i64: 32, 128>}, {transform_indices = @transform_10, window_bounds = array<i64: 32, 128>}, {transform_indices = @transform_11, window_bounds = array<i64: 32, 128>}]} {
    %c0 = arith.constant 0 : index
    %c0_0 = arith.constant 0 : index
    %0 = vector.load %arg1[%c0, %c0_0] : memref<32x128xf32, #tpu.memory_space<vmem>>, vector<32x128xf32>
    %cst = arith.constant dense<0.000000e+00> : vector<32xf32>
    %1 = vector.multi_reduction <add>, %0, %cst [1] : vector<32x128xf32> to vector<32xf32>
    %2 = vector.shape_cast %1 : vector<32xf32> to vector<32x1xf32>
    %cst_1 = arith.constant 1.562500e-02 : f32
    %3 = vector.broadcast %cst_1 : f32 to vector<32x1xf32>
    %4 = arith.mulf %2, %3 : vector<32x1xf32>
    %5 = arith.mulf %0, %0 : vector<32x128xf32>
    %cst_2 = arith.constant dense<0.000000e+00> : vector<32xf32>
    %6 = vector.multi_reduction <add>, %5, %cst_2 [1] : vector<32x128xf32> to vector<32xf32>
    %7 = vector.shape_cast %6 : vector<32xf32> to vector<32x1xf32>
    %cst_3 = arith.constant 1.562500e-02 : f32
    %8 = vector.broadcast %cst_3 : f32 to vector<32x1xf32>
    %9 = arith.mulf %7, %8 : vector<32x1xf32>
    %10 = arith.mulf %4, %4 : vector<32x1xf32>
    %11 = arith.subf %9, %10 : vector<32x1xf32>
    %cst_4 = arith.constant 9.99999974E-6 : f32
    %12 = vector.broadcast %cst_4 : f32 to vector<32x1xf32>
    %13 = arith.addf %11, %12 : vector<32x1xf32>
    %14 = math.rsqrt %13 : vector<32x1xf32>
    %15 = vector.broadcast %4 : vector<32x1xf32> to vector<32x128xf32>
    %16 = arith.subf %0, %15 : vector<32x128xf32>
    %17 = vector.broadcast %14 : vector<32x1xf32> to vector<32x128xf32>
    %18 = arith.mulf %16, %17 : vector<32x128xf32>
    %c0_5 = arith.constant 0 : index
    %c0_6 = arith.constant 0 : index
    %19 = vector.load %arg2[%c0_5, %c0_6] : memref<1x128xf32, #tpu.memory_space<vmem>>, vector<1x128xf32>
    %20 = vector.broadcast %19 : vector<1x128xf32> to vector<32x128xf32>
    %21 = arith.mulf %18, %20 : vector<32x128xf32>
    %c0_7 = arith.constant 0 : index
    %c0_8 = arith.constant 0 : index
    %22 = vector.load %arg3[%c0_7, %c0_8] : memref<1x128xf32, #tpu.memory_space<vmem>>, vector<1x128xf32>
    %23 = vector.broadcast %22 : vector<1x128xf32> to vector<32x128xf32>
    %24 = arith.addf %21, %23 : vector<32x128xf32>
    %c0_9 = arith.constant 0 : index
    %c0_10 = arith.constant 0 : index
    %25 = vector.load %arg4[%c0_9, %c0_10] : memref<128x128xf32, #tpu.memory_space<vmem>>, vector<128x128xf32>
    %cst_11 = arith.constant dense<0.000000e+00> : vector<32x128xf32>
    %26 = tpu.matmul %24, %25, %cst_11 {dimension_numbers = #tpu.dot_dimension_numbers<[1], [0], [0], [1], [0, 0, 1, 1], [], []>} : vector<32x128xf32>, vector<128x128xf32>, vector<32x128xf32> -> vector<32x128xf32>
    %c0_12 = arith.constant 0 : index
    %c0_13 = arith.constant 0 : index
    %27 = vector.load %arg5[%c0_12, %c0_13] : memref<1x128xf32, #tpu.memory_space<vmem>>, vector<1x128xf32>
    %28 = vector.broadcast %27 : vector<1x128xf32> to vector<32x128xf32>
    %29 = arith.addf %26, %28 : vector<32x128xf32>
    %c0_14 = arith.constant 0 : index
    %c0_15 = arith.constant 0 : index
    %30 = vector.load %arg10[%c0_14, %c0_15] : memref<32x128xf32, #tpu.memory_space<vmem>>, vector<32x128xf32>
    tpu.vector_store %arg10[%c0_14, %c0_15], %29 {strides = array<i32>} : memref<32x128xf32, #tpu.memory_space<vmem>>, vector<32x128xf32>,
    %c0_16 = arith.constant 0 : index
    %c0_17 = arith.constant 0 : index
    %31 = vector.load %arg6[%c0_16, %c0_17] : memref<128x128xf32, #tpu.memory_space<vmem>>, vector<128x128xf32>
    %cst_18 = arith.constant dense<0.000000e+00> : vector<32x128xf32>
    %32 = tpu.matmul %24, %31, %cst_18 {dimension_numbers = #tpu.dot_dimension_numbers<[1], [0], [0], [1], [0, 0, 1, 1], [], []>} : vector<32x128xf32>, vector<128x128xf32>, vector<32x128xf32> -> vector<32x128xf32>
    %c0_19 = arith.constant 0 : index
    %c0_20 = arith.constant 0 : index
    %33 = vector.load %arg7[%c0_19, %c0_20] : memref<1x128xf32, #tpu.memory_space<vmem>>, vector<1x128xf32>
    %34 = vector.broadcast %33 : vector<1x128xf32> to vector<32x128xf32>
    %35 = arith.addf %32, %34 : vector<32x128xf32>
    %c0_21 = arith.constant 0 : index
    %c0_22 = arith.constant 0 : index
    %36 = vector.load %arg11[%c0_21, %c0_22] : memref<32x128xf32, #tpu.memory_space<vmem>>, vector<32x128xf32>
    tpu.vector_store %arg11[%c0_21, %c0_22], %35 {strides = array<i32>} : memref<32x128xf32, #tpu.memory_space<vmem>>, vector<32x128xf32>,
    %c0_23 = arith.constant 0 : index
    %c0_24 = arith.constant 0 : index
    %37 = vector.load %arg8[%c0_23, %c0_24] : memref<128x128xf32, #tpu.memory_space<vmem>>, vector<128x128xf32>
    %cst_25 = arith.constant dense<0.000000e+00> : vector<32x128xf32>
    %38 = tpu.matmul %24, %37, %cst_25 {dimension_numbers = #tpu.dot_dimension_numbers<[1], [0], [0], [1], [0, 0, 1, 1], [], []>} : vector<32x128xf32>, vector<128x128xf32>, vector<32x128xf32> -> vector<32x128xf32>
    %c0_26 = arith.constant 0 : index
    %c0_27 = arith.constant 0 : index
    %39 = vector.load %arg9[%c0_26, %c0_27] : memref<1x128xf32, #tpu.memory_space<vmem>>, vector<1x128xf32>
    %40 = vector.broadcast %39 : vector<1x128xf32> to vector<32x128xf32>
    %41 = arith.addf %38, %40 : vector<32x128xf32>
    %c0_28 = arith.constant 0 : index
    %c0_29 = arith.constant 0 : index
    %42 = vector.load %arg12[%c0_28, %c0_29] : memref<32x128xf32, #tpu.memory_space<vmem>>, vector<32x128xf32>
    tpu.vector_store %arg12[%c0_28, %c0_29], %41 {strides = array<i32>} : memref<32x128xf32, #tpu.memory_space<vmem>>, vector<32x128xf32>,
    return
  }
  func.func @transform_0(%arg0: i32) -> (i32, i32) {
    %c0_i32 = arith.constant 0 : i32
    %c0_i32_0 = arith.constant 0 : i32
    return %arg0, %c0_i32 : i32, i32
  }
  func.func @transform_1(%arg0: i32) -> (i32, i32) {
    %c0_i32 = arith.constant 0 : i32
    %c0_i32_0 = arith.constant 0 : i32
    %c0_i32_1 = arith.constant 0 : i32
    return %c0_i32, %c0_i32_0 : i32, i32
  }
  func.func @transform_2(%arg0: i32) -> (i32, i32) {
    %c0_i32 = arith.constant 0 : i32
    %c0_i32_0 = arith.constant 0 : i32
    %c0_i32_1 = arith.constant 0 : i32
    return %c0_i32, %c0_i32_0 : i32, i32
  }
  func.func @transform_3(%arg0: i32) -> (i32, i32) {
    %c0_i32 = arith.constant 0 : i32
    %c0_i32_0 = arith.constant 0 : i32
    %c0_i32_1 = arith.constant 0 : i32
    return %c0_i32, %c0_i32_0 : i32, i32
  }
  func.func @transform_4(%arg0: i32) -> (i32, i32) {
    %c0_i32 = arith.constant 0 : i32
    %c0_i32_0 = arith.constant 0 : i32
    %c0_i32_1 = arith.constant 0 : i32
    return %c0_i32, %c0_i32_0 : i32, i32
  }
  func.func @transform_5(%arg0: i32) -> (i32, i32) {
    %c0_i32 = arith.constant 0 : i32
    %c0_i32_0 = arith.constant 0 : i32
    %c0_i32_1 = arith.constant 0 : i32
    return %c0_i32, %c0_i32_0 : i32, i32
  }
  func.func @transform_6(%arg0: i32) -> (i32, i32) {
    %c0_i32 = arith.constant 0 : i32
    %c0_i32_0 = arith.constant 0 : i32
    %c0_i32_1 = arith.constant 0 : i32
    return %c0_i32, %c0_i32_0 : i32, i32
  }
  func.func @transform_7(%arg0: i32) -> (i32, i32) {
    %c0_i32 = arith.constant 0 : i32
    %c0_i32_0 = arith.constant 0 : i32
    %c0_i32_1 = arith.constant 0 : i32
    return %c0_i32, %c0_i32_0 : i32, i32
  }
  func.func @transform_8(%arg0: i32) -> (i32, i32) {
    %c0_i32 = arith.constant 0 : i32
    %c0_i32_0 = arith.constant 0 : i32
    %c0_i32_1 = arith.constant 0 : i32
    return %c0_i32, %c0_i32_0 : i32, i32
  }
  func.func @transform_9(%arg0: i32) -> (i32, i32) {
    %c0_i32 = arith.constant 0 : i32
    %c0_i32_0 = arith.constant 0 : i32
    return %arg0, %c0_i32 : i32, i32
  }
  func.func @transform_10(%arg0: i32) -> (i32, i32) {
    %c0_i32 = arith.constant 0 : i32
    %c0_i32_0 = arith.constant 0 : i32
    return %arg0, %c0_i32 : i32, i32
  }
  func.func @transform_11(%arg0: i32) -> (i32, i32) {
    %c0_i32 = arith.constant 0 : i32
    %c0_i32_0 = arith.constant 0 : i32
    return %arg0, %c0_i32 : i32, i32
  }
}

module attributes {stable_mosaic.version = 11 : i64} {
  func.func @_attn_kernel(%arg0: i32, %arg1: i32, %arg2: memref<1x1x16x16xf32, #tpu.memory_space<vmem>>, %arg3: memref<1x1x16x16xf32, #tpu.memory_space<vmem>>, %arg4: memref<1x1x16x16xf32, #tpu.memory_space<vmem>>, %arg5: memref<1x1x16x16xf32, #tpu.memory_space<vmem>>) attributes {dimension_semantics = [#tpu.dimension_semantics<parallel>, #tpu.dimension_semantics<parallel>], iteration_bounds = array<i64: 2, 4>, scalar_prefetch = 0 : i64, scratch_operands = 0 : i64, tpu.core_type = #tpu.core_type<tc>, window_params = [{transform_indices = @transform_0, window_bounds = array<i64: 1, 1, 16, 16>}, {transform_indices = @transform_1, window_bounds = array<i64: 1, 1, 16, 16>}, {transform_indices = @transform_2, window_bounds = array<i64: 1, 1, 16, 16>}, {transform_indices = @transform_3, window_bounds = array<i64: 1, 1, 16, 16>}]} {
    %c0 = arith.constant 0 : index
    %c0_0 = arith.constant 0 : index
    %c0_1 = arith.constant 0 : index
    %c0_2 = arith.constant 0 : index
    %0 = vector.load %arg2[%c0, %c0_0, %c0_1, %c0_2] : memref<1x1x16x16xf32, #tpu.memory_space<vmem>>, vector<1x1x16x16xf32>
    %1 = vector.shape_cast %0 : vector<1x1x16x16xf32> to vector<16x16xf32>
    %cst = arith.constant 2.500000e-01 : f32
    %2 = vector.broadcast %cst : f32 to vector<16x16xf32>
    %3 = arith.mulf %1, %2 : vector<16x16xf32>
    %c0_3 = arith.constant 0 : index
    %c0_4 = arith.constant 0 : index
    %c0_5 = arith.constant 0 : index
    %c0_6 = arith.constant 0 : index
    %4 = vector.load %arg3[%c0_3, %c0_4, %c0_5, %c0_6] : memref<1x1x16x16xf32, #tpu.memory_space<vmem>>, vector<1x1x16x16xf32>
    %5 = vector.shape_cast %4 : vector<1x1x16x16xf32> to vector<16x16xf32>
    %cst_7 = arith.constant dense<0.000000e+00> : vector<16x16xf32>
    %6 = tpu.matmul %3, %5, %cst_7 {dimension_numbers = #tpu.dot_dimension_numbers<[1], [1], [0], [0], [0, 0, 1, 0], [], []>} : vector<16x16xf32>, vector<16x16xf32>, vector<16x16xf32> -> vector<16x16xf32>
    %cst_8 = arith.constant dense<0xFF800000> : vector<16xf32>
    %7 = vector.multi_reduction <maximumf>, %6, %cst_8 [1] : vector<16x16xf32> to vector<16xf32>
    %8 = vector.shape_cast %7 : vector<16xf32> to vector<16x1xf32>
    %9 = vector.broadcast %8 : vector<16x1xf32> to vector<16x16xf32>
    %10 = arith.subf %6, %9 : vector<16x16xf32>
    %11 = math.exp %10 : vector<16x16xf32>
    %cst_9 = arith.constant dense<0.000000e+00> : vector<16xf32>
    %12 = vector.multi_reduction <add>, %11, %cst_9 [1] : vector<16x16xf32> to vector<16xf32>
    %13 = vector.shape_cast %12 : vector<16xf32> to vector<16x1xf32>
    %c0_10 = arith.constant 0 : index
    %c0_11 = arith.constant 0 : index
    %c0_12 = arith.constant 0 : index
    %c0_13 = arith.constant 0 : index
    %14 = vector.load %arg4[%c0_10, %c0_11, %c0_12, %c0_13] : memref<1x1x16x16xf32, #tpu.memory_space<vmem>>, vector<1x1x16x16xf32>
    %15 = vector.shape_cast %14 : vector<1x1x16x16xf32> to vector<16x16xf32>
    %cst_14 = arith.constant dense<0.000000e+00> : vector<16x16xf32>
    %16 = tpu.matmul %11, %15, %cst_14 {dimension_numbers = #tpu.dot_dimension_numbers<[1], [0], [0], [1], [0, 0, 1, 1], [], []>} : vector<16x16xf32>, vector<16x16xf32>, vector<16x16xf32> -> vector<16x16xf32>
    %17 = vector.broadcast %13 : vector<16x1xf32> to vector<16x16xf32>
    %18 = arith.divf %16, %17 : vector<16x16xf32>
    %c0_15 = arith.constant 0 : index
    %c0_16 = arith.constant 0 : index
    %c0_17 = arith.constant 0 : index
    %c0_18 = arith.constant 0 : index
    %19 = vector.load %arg5[%c0_15, %c0_16, %c0_17, %c0_18] : memref<1x1x16x16xf32, #tpu.memory_space<vmem>>, vector<1x1x16x16xf32>
    %20 = vector.shape_cast %19 : vector<1x1x16x16xf32> to vector<16x16xf32>
    %21 = vector.shape_cast %18 : vector<16x16xf32> to vector<1x1x16x16xf32>
    tpu.vector_store %arg5[%c0_15, %c0_16, %c0_17, %c0_18], %21 {strides = array<i32>} : memref<1x1x16x16xf32, #tpu.memory_space<vmem>>, vector<1x1x16x16xf32>,
    return
  }
  func.func @transform_0(%arg0: i32, %arg1: i32) -> (i32, i32, i32, i32) {
    %c0_i32 = arith.constant 0 : i32
    %c0_i32_0 = arith.constant 0 : i32
    %c0_i32_1 = arith.constant 0 : i32
    return %arg0, %arg1, %c0_i32, %c0_i32_0 : i32, i32, i32, i32
  }
  func.func @transform_1(%arg0: i32, %arg1: i32) -> (i32, i32, i32, i32) {
    %c0_i32 = arith.constant 0 : i32
    %c0_i32_0 = arith.constant 0 : i32
    %c0_i32_1 = arith.constant 0 : i32
    return %arg0, %arg1, %c0_i32, %c0_i32_0 : i32, i32, i32, i32
  }
  func.func @transform_2(%arg0: i32, %arg1: i32) -> (i32, i32, i32, i32) {
    %c0_i32 = arith.constant 0 : i32
    %c0_i32_0 = arith.constant 0 : i32
    %c0_i32_1 = arith.constant 0 : i32
    return %arg0, %arg1, %c0_i32, %c0_i32_0 : i32, i32, i32, i32
  }
  func.func @transform_3(%arg0: i32, %arg1: i32) -> (i32, i32, i32, i32) {
    %c0_i32 = arith.constant 0 : i32
    %c0_i32_0 = arith.constant 0 : i32
    %c0_i32_1 = arith.constant 0 : i32
    return %arg0, %arg1, %c0_i32, %c0_i32_0 : i32, i32, i32, i32
  }
}

module attributes {stable_mosaic.version = 11 : i64} {
  func.func @_proj_residual_kernel(%arg0: i32, %arg1: memref<32x128xf32, #tpu.memory_space<vmem>>, %arg2: memref<32x128xf32, #tpu.memory_space<vmem>>, %arg3: memref<128x128xf32, #tpu.memory_space<vmem>>, %arg4: memref<1x128xf32, #tpu.memory_space<vmem>>, %arg5: memref<32x128xf32, #tpu.memory_space<vmem>>) attributes {dimension_semantics = [#tpu.dimension_semantics<parallel>], iteration_bounds = array<i64: 1>, scalar_prefetch = 0 : i64, scratch_operands = 0 : i64, tpu.core_type = #tpu.core_type<tc>, window_params = [{transform_indices = @transform_0, window_bounds = array<i64: 32, 128>}, {transform_indices = @transform_1, window_bounds = array<i64: 32, 128>}, {pipeline_mode = #tpu.pipeline_mode<synchronous>, transform_indices = @transform_2, window_bounds = array<i64: 128, 128>}, {pipeline_mode = #tpu.pipeline_mode<synchronous>, transform_indices = @transform_3, window_bounds = array<i64: 1, 128>}, {transform_indices = @transform_4, window_bounds = array<i64: 32, 128>}]} {
    %c0 = arith.constant 0 : index
    %c0_0 = arith.constant 0 : index
    %0 = vector.load %arg2[%c0, %c0_0] : memref<32x128xf32, #tpu.memory_space<vmem>>, vector<32x128xf32>
    %c0_1 = arith.constant 0 : index
    %c0_2 = arith.constant 0 : index
    %1 = vector.load %arg3[%c0_1, %c0_2] : memref<128x128xf32, #tpu.memory_space<vmem>>, vector<128x128xf32>
    %cst = arith.constant dense<0.000000e+00> : vector<32x128xf32>
    %2 = tpu.matmul %0, %1, %cst {dimension_numbers = #tpu.dot_dimension_numbers<[1], [0], [0], [1], [0, 0, 1, 1], [], []>} : vector<32x128xf32>, vector<128x128xf32>, vector<32x128xf32> -> vector<32x128xf32>
    %c0_3 = arith.constant 0 : index
    %c0_4 = arith.constant 0 : index
    %3 = vector.load %arg4[%c0_3, %c0_4] : memref<1x128xf32, #tpu.memory_space<vmem>>, vector<1x128xf32>
    %4 = vector.broadcast %3 : vector<1x128xf32> to vector<32x128xf32>
    %5 = arith.addf %2, %4 : vector<32x128xf32>
    %c0_5 = arith.constant 0 : index
    %c0_6 = arith.constant 0 : index
    %6 = vector.load %arg1[%c0_5, %c0_6] : memref<32x128xf32, #tpu.memory_space<vmem>>, vector<32x128xf32>
    %7 = arith.addf %5, %6 : vector<32x128xf32>
    %c0_7 = arith.constant 0 : index
    %c0_8 = arith.constant 0 : index
    %8 = vector.load %arg5[%c0_7, %c0_8] : memref<32x128xf32, #tpu.memory_space<vmem>>, vector<32x128xf32>
    tpu.vector_store %arg5[%c0_7, %c0_8], %7 {strides = array<i32>} : memref<32x128xf32, #tpu.memory_space<vmem>>, vector<32x128xf32>,
    return
  }
  func.func @transform_0(%arg0: i32) -> (i32, i32) {
    %c0_i32 = arith.constant 0 : i32
    %c0_i32_0 = arith.constant 0 : i32
    return %arg0, %c0_i32 : i32, i32
  }
  func.func @transform_1(%arg0: i32) -> (i32, i32) {
    %c0_i32 = arith.constant 0 : i32
    %c0_i32_0 = arith.constant 0 : i32
    return %arg0, %c0_i32 : i32, i32
  }
  func.func @transform_2(%arg0: i32) -> (i32, i32) {
    %c0_i32 = arith.constant 0 : i32
    %c0_i32_0 = arith.constant 0 : i32
    %c0_i32_1 = arith.constant 0 : i32
    return %c0_i32, %c0_i32_0 : i32, i32
  }
  func.func @transform_3(%arg0: i32) -> (i32, i32) {
    %c0_i32 = arith.constant 0 : i32
    %c0_i32_0 = arith.constant 0 : i32
    %c0_i32_1 = arith.constant 0 : i32
    return %c0_i32, %c0_i32_0 : i32, i32
  }
  func.func @transform_4(%arg0: i32) -> (i32, i32) {
    %c0_i32 = arith.constant 0 : i32
    %c0_i32_0 = arith.constant 0 : i32
    return %arg0, %c0_i32 : i32, i32
  }
}

module attributes {stable_mosaic.version = 11 : i64} {
  func.func @_ln_ffn_adapter_kernel(%arg0: i32, %arg1: memref<32x128xf32, #tpu.memory_space<vmem>>, %arg2: memref<1x128xf32, #tpu.memory_space<vmem>>, %arg3: memref<1x128xf32, #tpu.memory_space<vmem>>, %arg4: memref<128x256xf32, #tpu.memory_space<vmem>>, %arg5: memref<1x256xf32, #tpu.memory_space<vmem>>, %arg6: memref<256x128xf32, #tpu.memory_space<vmem>>, %arg7: memref<1x128xf32, #tpu.memory_space<vmem>>, %arg8: memref<128x128xf32, #tpu.memory_space<vmem>>, %arg9: memref<1x128xf32, #tpu.memory_space<vmem>>, %arg10: memref<128x128xf32, #tpu.memory_space<vmem>>, %arg11: memref<1x128xf32, #tpu.memory_space<vmem>>, %arg12: memref<32x128xf32, #tpu.memory_space<vmem>>) attributes {dimension_semantics = [#tpu.dimension_semantics<parallel>], iteration_bounds = array<i64: 1>, scalar_prefetch = 0 : i64, scratch_operands = 0 : i64, tpu.core_type = #tpu.core_type<tc>, window_params = [{transform_indices = @transform_0, window_bounds = array<i64: 32, 128>}, {pipeline_mode = #tpu.pipeline_mode<synchronous>, transform_indices = @transform_1, window_bounds = array<i64: 1, 128>}, {pipeline_mode = #tpu.pipeline_mode<synchronous>, transform_indices = @transform_2, window_bounds = array<i64: 1, 128>}, {pipeline_mode = #tpu.pipeline_mode<synchronous>, transform_indices = @transform_3, window_bounds = array<i64: 128, 256>}, {pipeline_mode = #tpu.pipeline_mode<synchronous>, transform_indices = @transform_4, window_bounds = array<i64: 1, 256>}, {pipeline_mode = #tpu.pipeline_mode<synchronous>, transform_indices = @transform_5, window_bounds = array<i64: 256, 128>}, {pipeline_mode = #tpu.pipeline_mode<synchronous>, transform_indices = @transform_6, window_bounds = array<i64: 1, 128>}, {pipeline_mode = #tpu.pipeline_mode<synchronous>, transform_indices = @transform_7, window_bounds = array<i64: 128, 128>}, {pipeline_mode = #tpu.pipeline_mode<synchronous>, transform_indices = @transform_8, window_bounds = array<i64: 1, 128>}, {pipeline_mode = #tpu.pipeline_mode<synchronous>, transform_indices = @transform_9, window_bounds = array<i64: 128, 128>}, {pipeline_mode = #tpu.pipeline_mode<synchronous>, transform_indices = @transform_10, window_bounds = array<i64: 1, 128>}, {transform_indices = @transform_11, window_bounds = array<i64: 32, 128>}]} {
    %c0 = arith.constant 0 : index
    %c0_0 = arith.constant 0 : index
    %0 = vector.load %arg1[%c0, %c0_0] : memref<32x128xf32, #tpu.memory_space<vmem>>, vector<32x128xf32>
    %cst = arith.constant dense<0.000000e+00> : vector<32xf32>
    %1 = vector.multi_reduction <add>, %0, %cst [1] : vector<32x128xf32> to vector<32xf32>
    %2 = vector.shape_cast %1 : vector<32xf32> to vector<32x1xf32>
    %cst_1 = arith.constant 1.562500e-02 : f32
    %3 = vector.broadcast %cst_1 : f32 to vector<32x1xf32>
    %4 = arith.mulf %2, %3 : vector<32x1xf32>
    %5 = arith.mulf %0, %0 : vector<32x128xf32>
    %cst_2 = arith.constant dense<0.000000e+00> : vector<32xf32>
    %6 = vector.multi_reduction <add>, %5, %cst_2 [1] : vector<32x128xf32> to vector<32xf32>
    %7 = vector.shape_cast %6 : vector<32xf32> to vector<32x1xf32>
    %cst_3 = arith.constant 1.562500e-02 : f32
    %8 = vector.broadcast %cst_3 : f32 to vector<32x1xf32>
    %9 = arith.mulf %7, %8 : vector<32x1xf32>
    %10 = arith.mulf %4, %4 : vector<32x1xf32>
    %11 = arith.subf %9, %10 : vector<32x1xf32>
    %cst_4 = arith.constant 9.99999974E-6 : f32
    %12 = vector.broadcast %cst_4 : f32 to vector<32x1xf32>
    %13 = arith.addf %11, %12 : vector<32x1xf32>
    %14 = math.rsqrt %13 : vector<32x1xf32>
    %15 = vector.broadcast %4 : vector<32x1xf32> to vector<32x128xf32>
    %16 = arith.subf %0, %15 : vector<32x128xf32>
    %17 = vector.broadcast %14 : vector<32x1xf32> to vector<32x128xf32>
    %18 = arith.mulf %16, %17 : vector<32x128xf32>
    %c0_5 = arith.constant 0 : index
    %c0_6 = arith.constant 0 : index
    %19 = vector.load %arg2[%c0_5, %c0_6] : memref<1x128xf32, #tpu.memory_space<vmem>>, vector<1x128xf32>
    %20 = vector.broadcast %19 : vector<1x128xf32> to vector<32x128xf32>
    %21 = arith.mulf %18, %20 : vector<32x128xf32>
    %c0_7 = arith.constant 0 : index
    %c0_8 = arith.constant 0 : index
    %22 = vector.load %arg3[%c0_7, %c0_8] : memref<1x128xf32, #tpu.memory_space<vmem>>, vector<1x128xf32>
    %23 = vector.broadcast %22 : vector<1x128xf32> to vector<32x128xf32>
    %24 = arith.addf %21, %23 : vector<32x128xf32>
    %c0_9 = arith.constant 0 : index
    %c0_10 = arith.constant 0 : index
    %25 = vector.load %arg4[%c0_9, %c0_10] : memref<128x256xf32, #tpu.memory_space<vmem>>, vector<128x256xf32>
    %cst_11 = arith.constant dense<0.000000e+00> : vector<32x256xf32>
    %26 = tpu.matmul %24, %25, %cst_11 {dimension_numbers = #tpu.dot_dimension_numbers<[1], [0], [0], [1], [0, 0, 1, 1], [], []>} : vector<32x128xf32>, vector<128x256xf32>, vector<32x256xf32> -> vector<32x256xf32>
    %c0_12 = arith.constant 0 : index
    %c0_13 = arith.constant 0 : index
    %27 = vector.load %arg5[%c0_12, %c0_13] : memref<1x256xf32, #tpu.memory_space<vmem>>, vector<1x256xf32>
    %28 = vector.broadcast %27 : vector<1x256xf32> to vector<32x256xf32>
    %29 = arith.addf %26, %28 : vector<32x256xf32>
    %cst_14 = arith.constant 5.000000e-01 : f32
    %30 = vector.broadcast %cst_14 : f32 to vector<32x256xf32>
    %31 = arith.mulf %30, %29 : vector<32x256xf32>
    %32 = arith.mulf %29, %29 : vector<32x256xf32>
    %33 = arith.mulf %32, %29 : vector<32x256xf32>
    %cst_15 = arith.constant 4.471500e-02 : f32
    %34 = vector.broadcast %cst_15 : f32 to vector<32x256xf32>
    %35 = arith.mulf %34, %33 : vector<32x256xf32>
    %36 = arith.addf %29, %35 : vector<32x256xf32>
    %cst_16 = arith.constant 0.797884583 : f32
    %37 = vector.broadcast %cst_16 : f32 to vector<32x256xf32>
    %38 = arith.mulf %37, %36 : vector<32x256xf32>
    %39 = math.tanh %38 : vector<32x256xf32>
    %cst_17 = arith.constant 1.000000e+00 : f32
    %40 = vector.broadcast %cst_17 : f32 to vector<32x256xf32>
    %41 = arith.addf %40, %39 : vector<32x256xf32>
    %42 = arith.mulf %31, %41 : vector<32x256xf32>
    %c0_18 = arith.constant 0 : index
    %c0_19 = arith.constant 0 : index
    %43 = vector.load %arg6[%c0_18, %c0_19] : memref<256x128xf32, #tpu.memory_space<vmem>>, vector<256x128xf32>
    %cst_20 = arith.constant dense<0.000000e+00> : vector<32x128xf32>
    %44 = tpu.matmul %42, %43, %cst_20 {dimension_numbers = #tpu.dot_dimension_numbers<[1], [0], [0], [1], [0, 0, 1, 1], [], []>} : vector<32x256xf32>, vector<256x128xf32>, vector<32x128xf32> -> vector<32x128xf32>
    %c0_21 = arith.constant 0 : index
    %c0_22 = arith.constant 0 : index
    %45 = vector.load %arg7[%c0_21, %c0_22] : memref<1x128xf32, #tpu.memory_space<vmem>>, vector<1x128xf32>
    %46 = vector.broadcast %45 : vector<1x128xf32> to vector<32x128xf32>
    %47 = arith.addf %44, %46 : vector<32x128xf32>
    %c0_23 = arith.constant 0 : index
    %c0_24 = arith.constant 0 : index
    %48 = vector.load %arg8[%c0_23, %c0_24] : memref<128x128xf32, #tpu.memory_space<vmem>>, vector<128x128xf32>
    %cst_25 = arith.constant dense<0.000000e+00> : vector<32x128xf32>
    %49 = tpu.matmul %24, %48, %cst_25 {dimension_numbers = #tpu.dot_dimension_numbers<[1], [0], [0], [1], [0, 0, 1, 1], [], []>} : vector<32x128xf32>, vector<128x128xf32>, vector<32x128xf32> -> vector<32x128xf32>
    %c0_26 = arith.constant 0 : index
    %c0_27 = arith.constant 0 : index
    %50 = vector.load %arg9[%c0_26, %c0_27] : memref<1x128xf32, #tpu.memory_space<vmem>>, vector<1x128xf32>
    %51 = vector.broadcast %50 : vector<1x128xf32> to vector<32x128xf32>
    %52 = arith.addf %49, %51 : vector<32x128xf32>
    %cst_28 = arith.constant 0.000000e+00 : f32
    %53 = vector.broadcast %cst_28 : f32 to vector<32x128xf32>
    %54 = arith.maximumf %52, %53 : vector<32x128xf32>
    %c0_29 = arith.constant 0 : index
    %c0_30 = arith.constant 0 : index
    %55 = vector.load %arg10[%c0_29, %c0_30] : memref<128x128xf32, #tpu.memory_space<vmem>>, vector<128x128xf32>
    %cst_31 = arith.constant dense<0.000000e+00> : vector<32x128xf32>
    %56 = tpu.matmul %54, %55, %cst_31 {dimension_numbers = #tpu.dot_dimension_numbers<[1], [0], [0], [1], [0, 0, 1, 1], [], []>} : vector<32x128xf32>, vector<128x128xf32>, vector<32x128xf32> -> vector<32x128xf32>
    %c0_32 = arith.constant 0 : index
    %c0_33 = arith.constant 0 : index
    %57 = vector.load %arg11[%c0_32, %c0_33] : memref<1x128xf32, #tpu.memory_space<vmem>>, vector<1x128xf32>
    %58 = vector.broadcast %57 : vector<1x128xf32> to vector<32x128xf32>
    %59 = arith.addf %56, %58 : vector<32x128xf32>
    %60 = arith.addf %0, %47 : vector<32x128xf32>
    %cst_34 = arith.constant 2.000000e-01 : f32
    %61 = vector.broadcast %cst_34 : f32 to vector<32x128xf32>
    %62 = arith.mulf %61, %59 : vector<32x128xf32>
    %63 = arith.addf %60, %62 : vector<32x128xf32>
    %c0_35 = arith.constant 0 : index
    %c0_36 = arith.constant 0 : index
    %64 = vector.load %arg12[%c0_35, %c0_36] : memref<32x128xf32, #tpu.memory_space<vmem>>, vector<32x128xf32>
    tpu.vector_store %arg12[%c0_35, %c0_36], %63 {strides = array<i32>} : memref<32x128xf32, #tpu.memory_space<vmem>>, vector<32x128xf32>,
    return
  }
  func.func @transform_0(%arg0: i32) -> (i32, i32) {
    %c0_i32 = arith.constant 0 : i32
    %c0_i32_0 = arith.constant 0 : i32
    return %arg0, %c0_i32 : i32, i32
  }
  func.func @transform_1(%arg0: i32) -> (i32, i32) {
    %c0_i32 = arith.constant 0 : i32
    %c0_i32_0 = arith.constant 0 : i32
    %c0_i32_1 = arith.constant 0 : i32
    return %c0_i32, %c0_i32_0 : i32, i32
  }
  func.func @transform_2(%arg0: i32) -> (i32, i32) {
    %c0_i32 = arith.constant 0 : i32
    %c0_i32_0 = arith.constant 0 : i32
    %c0_i32_1 = arith.constant 0 : i32
    return %c0_i32, %c0_i32_0 : i32, i32
  }
  func.func @transform_3(%arg0: i32) -> (i32, i32) {
    %c0_i32 = arith.constant 0 : i32
    %c0_i32_0 = arith.constant 0 : i32
    %c0_i32_1 = arith.constant 0 : i32
    return %c0_i32, %c0_i32_0 : i32, i32
  }
  func.func @transform_4(%arg0: i32) -> (i32, i32) {
    %c0_i32 = arith.constant 0 : i32
    %c0_i32_0 = arith.constant 0 : i32
    %c0_i32_1 = arith.constant 0 : i32
    return %c0_i32, %c0_i32_0 : i32, i32
  }
  func.func @transform_5(%arg0: i32) -> (i32, i32) {
    %c0_i32 = arith.constant 0 : i32
    %c0_i32_0 = arith.constant 0 : i32
    %c0_i32_1 = arith.constant 0 : i32
    return %c0_i32, %c0_i32_0 : i32, i32
  }
  func.func @transform_6(%arg0: i32) -> (i32, i32) {
    %c0_i32 = arith.constant 0 : i32
    %c0_i32_0 = arith.constant 0 : i32
    %c0_i32_1 = arith.constant 0 : i32
    return %c0_i32, %c0_i32_0 : i32, i32
  }
  func.func @transform_7(%arg0: i32) -> (i32, i32) {
    %c0_i32 = arith.constant 0 : i32
    %c0_i32_0 = arith.constant 0 : i32
    %c0_i32_1 = arith.constant 0 : i32
    return %c0_i32, %c0_i32_0 : i32, i32
  }
  func.func @transform_8(%arg0: i32) -> (i32, i32) {
    %c0_i32 = arith.constant 0 : i32
    %c0_i32_0 = arith.constant 0 : i32
    %c0_i32_1 = arith.constant 0 : i32
    return %c0_i32, %c0_i32_0 : i32, i32
  }
  func.func @transform_9(%arg0: i32) -> (i32, i32) {
    %c0_i32 = arith.constant 0 : i32
    %c0_i32_0 = arith.constant 0 : i32
    %c0_i32_1 = arith.constant 0 : i32
    return %c0_i32, %c0_i32_0 : i32, i32
  }
  func.func @transform_10(%arg0: i32) -> (i32, i32) {
    %c0_i32 = arith.constant 0 : i32
    %c0_i32_0 = arith.constant 0 : i32
    %c0_i32_1 = arith.constant 0 : i32
    return %c0_i32, %c0_i32_0 : i32, i32
  }
  func.func @transform_11(%arg0: i32) -> (i32, i32) {
    %c0_i32 = arith.constant 0 : i32
    %c0_i32_0 = arith.constant 0 : i32
    return %arg0, %c0_i32 : i32, i32
  }
}

</mosaic_0001>

<llo_original>
// kernel: block_forward.4
$region0: #{block_forward.4}
  #allocation0 [shape = 'u32[]', space=smem, size = 0x4, offset = 0x4, fixed_abs, tag = 'smem constant byte address 0x4 - core index']
  #allocation1 [shape = 'u32[72,128]{1,0:T(1,128)}', space=vmem, size = 0x9000, scoped, tag = 'internal scratch']
  %s0 = inlined_call_operand.vmem [shape: f32[32,128], index: 0, kind: input, shape index: {}]
  %s1 = inlined_call_operand.vmem [shape: f32[1,128], index: 1, kind: input, shape index: {}]
  %s2 = inlined_call_operand.vmem [shape: f32[1,128], index: 2, kind: input, shape index: {}]
  %s3 = inlined_call_operand.vmem [shape: f32[128,128], index: 3, kind: input, shape index: {}]
  %s4 = inlined_call_operand.vmem [shape: f32[1,128], index: 4, kind: input, shape index: {}]
  %s5 = inlined_call_operand.vmem [shape: f32[128,128], index: 5, kind: input, shape index: {}]
  %s6 = inlined_call_operand.vmem [shape: f32[1,128], index: 6, kind: input, shape index: {}]
  %s7 = inlined_call_operand.vmem [shape: f32[128,128], index: 7, kind: input, shape index: {}]
  %s8 = inlined_call_operand.vmem [shape: f32[1,128], index: 8, kind: input, shape index: {}]
  %s9 = inlined_call_operand.vmem [shape: f32[32,128], index: 9, kind: output, shape index: {0}]
  %s10 = inlined_call_operand.vmem [shape: f32[32,128], index: 10, kind: output, shape index: {1}]
  %s11 = inlined_call_operand.vmem [shape: f32[32,128], index: 11, kind: output, shape index: {2}]
  %12 = xla_tuple %s9, %s10, %s11
  %s13 = sld [smem:[#allocation0]]
  $region62: #{block_forward.4} parent=0
    _
  %s15 = ssub.s32 1, %s13
  %s16 = scalar_select 0, %s15, %s13
  // Predicated region
  $region2: #{block_forward.4} parent=0 // pred_check
    _
  $region3: #{block_forward.4} parent=0 // pred_check_branch
    %18 = sbr.rel (0) target = $region5
  $region4: #{block_forward.4} parent=0 // pred_region
    _
  $region5: #{block_forward.4} parent=0 // pred_fallthru
    _
  // Predicated region
  $region6: #{block_forward.4} parent=0 // pred_check
    _
  $region7: #{block_forward.4} parent=0 // pred_check_branch
    %20 = sbr.rel (0) target = $region9
  $region8: #{block_forward.4} parent=0 // pred_region
    _
  $region9: #{block_forward.4} parent=0 // pred_fallthru
    _
  // Predicated region
  $region10: #{block_forward.4} parent=0 // pred_check
    _
  $region11: #{block_forward.4} parent=0 // pred_check_branch
    %22 = sbr.rel (0) target = $region13
  $region12: #{block_forward.4} parent=0 // pred_region
    _
  $region13: #{block_forward.4} parent=0 // pred_fallthru
    _
  // Predicated region
  $region14: #{block_forward.4} parent=0 // pred_check
    _
  $region15: #{block_forward.4} parent=0 // pred_check_branch
    %24 = sbr.rel (0) target = $region17
  $region16: #{block_forward.4} parent=0 // pred_region
    _
  $region17: #{block_forward.4} parent=0 // pred_fallthru
    _
  // Predicated region
  $region18: #{block_forward.4} parent=0 // pred_check
    _
  $region19: #{block_forward.4} parent=0 // pred_check_branch
    %26 = sbr.rel (0) target = $region21
  $region20: #{block_forward.4} parent=0 // pred_region
    _
  $region21: #{block_forward.4} parent=0 // pred_fallthru
    _
  // Predicated region
  $region22: #{block_forward.4} parent=0 // pred_check
    _
  $region23: #{block_forward.4} parent=0 // pred_check_branch
    %28 = sbr.rel (0) target = $region25
  $region24: #{block_forward.4} parent=0 // pred_region
    _
  $region25: #{block_forward.4} parent=0 // pred_fallthru
    _
  // Predicated region
  $region26: #{block_forward.4} parent=0 // pred_check
    _
  $region27: #{block_forward.4} parent=0 // pred_check_branch
    %30 = sbr.rel (0) target = $region29
  $region28: #{block_forward.4} parent=0 // pred_region
    _
  $region29: #{block_forward.4} parent=0 // pred_fallthru
    _
  // Predicated region
  $region30: #{block_forward.4} parent=0 // pred_check
    _
  $region31: #{block_forward.4} parent=0 // pred_check_branch
    %32 = sbr.rel (0) target = $region33
  $region32: #{block_forward.4} parent=0 // pred_region
    _
  $region33: #{block_forward.4} parent=0 // pred_fallthru
    _
  // Predicated region
  $region34: #{block_forward.4} parent=0 // pred_check
    _
  $region35: #{block_forward.4} parent=0 // pred_check_branch
    %34 = sbr.rel (0) target = $region37
  $region36: #{block_forward.4} parent=0 // pred_region
    _
  $region37: #{block_forward.4} parent=0 // pred_fallthru
    _
  %v35 = vld [vmem:[%s0] sm:$0xff]
  %v36 = vld [vmem:[%s0 + $0x8] sm:$0xff]
  %v37 = vld [vmem:[%s0 + $0x10] sm:$0xff]
  %v38 = vld [vmem:[%s0 + $0x18] sm:$0xff]
  %39 = vadd.xlane.f32.xlu0 %v35
  %v40 = vpop.xlane.xlu0 %39
  %41 = vadd.xlane.f32.xlu0 %v36
  %v42 = vpop.xlane.xlu0 %41
  %43 = vadd.xlane.f32.xlu0 %v37
  %v44 = vpop.xlane.xlu0 %43
  %45 = vadd.xlane.f32.xlu0 %v38
  %v46 = vpop.xlane.xlu0 %45
  %v47 = vmul.f32 %v40, 0.015625
  %v48 = vmul.f32 %v42, 0.015625
  %v49 = vmul.f32 %v44, 0.015625
  %v50 = vmul.f32 %v46, 0.015625
  %v51 = vmul.f32 %v35, %v35
  %v52 = vmul.f32 %v36, %v36
  %v53 = vmul.f32 %v37, %v37
  %v54 = vmul.f32 %v38, %v38
  %55 = vadd.xlane.f32.xlu0 %v51
  %v56 = vpop.xlane.xlu0 %55
  %57 = vadd.xlane.f32.xlu0 %v52
  %v58 = vpop.xlane.xlu0 %57
  %59 = vadd.xlane.f32.xlu0 %v53
  %v60 = vpop.xlane.xlu0 %59
  %61 = vadd.xlane.f32.xlu0 %v54
  %v62 = vpop.xlane.xlu0 %61
  %v63 = vmul.f32 %v56, 0.015625
  %v64 = vmul.f32 %v58, 0.015625
  %v65 = vmul.f32 %v60, 0.015625
  %v66 = vmul.f32 %v62, 0.015625
  %v67 = vmul.f32 %v47, %v47
  %v68 = vmul.f32 %v48, %v48
  %v69 = vmul.f32 %v49, %v49
  %v70 = vmul.f32 %v50, %v50
  %v71 = vsub.f32 %v63, %v67
  %v72 = vsub.f32 %v64, %v68
  %v73 = vsub.f32 %v65, %v69
  %v74 = vsub.f32 %v66, %v70
  %v75 = vadd.f32 %v71, 1e-05
  %v76 = vadd.f32 %v72, 1e-05
  %v77 = vadd.f32 %v73, 1e-05
  %v78 = vadd.f32 %v74, 1e-05
  %v79 = vrsqrt.pop %v75
  %v80 = vmul.f32 %v79, %v75
  %v81 = vmul.f32 %v80, %v79
  %v82 = vmul.f32 0.5, %v81
  %v83 = vsub.f32 1.5, %v82
  %v84 = vmul.f32 %v79, %v83
  %vm85 = vweird.f32 %v75
  %vm86 = vweird.f32 %v79
  %vm87 = vmor %vm85, %vm86
  %v88 = vsel %vm87, %v79, %v84
  %v89 = vrsqrt.pop %v76
  %v90 = vmul.f32 %v89, %v76
  %v91 = vmul.f32 %v90, %v89
  %v92 = vmul.f32 0.5, %v91
  %v93 = vsub.f32 1.5, %v92
  %v94 = vmul.f32 %v89, %v93
  %vm95 = vweird.f32 %v76
  %vm96 = vweird.f32 %v89
  %vm97 = vmor %vm95, %vm96
  %v98 = vsel %vm97, %v89, %v94
  %v99 = vrsqrt.pop %v77
  %v100 = vmul.f32 %v99, %v77
  %v101 = vmul.f32 %v100, %v99
  %v102 = vmul.f32 0.5, %v101
  %v103 = vsub.f32 1.5, %v102
  %v104 = vmul.f32 %v99, %v103
  %vm105 = vweird.f32 %v77
  %vm106 = vweird.f32 %v99
  %vm107 = vmor %vm105, %vm106
  %v108 = vsel %vm107, %v99, %v104
  %v109 = vrsqrt.pop %v78
  %v110 = vmul.f32 %v109, %v78
  %v111 = vmul.f32 %v110, %v109
  %v112 = vmul.f32 0.5, %v111
  %v113 = vsub.f32 1.5, %v112
  %v114 = vmul.f32 %v109, %v113
  %vm115 = vweird.f32 %v78
  %vm116 = vweird.f32 %v109
  %vm117 = vmor %vm115, %vm116
  %v118 = vsel %vm117, %v109, %v114
  %v119 = vsub.f32 %v35, %v47
  %v120 = vsub.f32 %v36, %v48
  %v121 = vsub.f32 %v37, %v49
  %v122 = vsub.f32 %v38, %v50
  %v123 = vmul.f32 %v119, %v88
  %v124 = vmul.f32 %v120, %v98
  %v125 = vmul.f32 %v121, %v108
  %v126 = vmul.f32 %v122, %v118
  %v127 = vld [vmem:[%s1] sm:$0x1]
  %v129 = vperm.slane %v127, 0
  %v131 = vmul.f32 %v123, %v129
  %v132 = vmul.f32 %v124, %v129
  %v133 = vmul.f32 %v125, %v129
  %v134 = vmul.f32 %v126, %v129
  %v135 = vld [vmem:[%s2] sm:$0x1]
  %v137 = vperm.slane %v135, 0
  %v139 = vadd.f32 %v131, %v137
  %v140 = vadd.f32 %v132, %v137
  %v141 = vadd.f32 %v133, %v137
  %v142 = vadd.f32 %v134, %v137
  %v143 = vld [vmem:[%s3] sm:$0xff]
  %v144 = vld [vmem:[%s3 + $0x8] sm:$0xff]
  %v145 = vld [vmem:[%s3 + $0x10] sm:$0xff]
  %v146 = vld [vmem:[%s3 + $0x18] sm:$0xff]
  %v147 = vld [vmem:[%s3 + $0x20] sm:$0xff]
  %v148 = vld [vmem:[%s3 + $0x28] sm:$0xff]
  %v149 = vld [vmem:[%s3 + $0x30] sm:$0xff]
  %v150 = vld [vmem:[%s3 + $0x38] sm:$0xff]
  %v151 = vld [vmem:[%s3 + $0x40] sm:$0xff]
  %v152 = vld [vmem:[%s3 + $0x48] sm:$0xff]
  %v153 = vld [vmem:[%s3 + $0x50] sm:$0xff]
  %v154 = vld [vmem:[%s3 + $0x58] sm:$0xff]
  %v155 = vld [vmem:[%s3 + $0x60] sm:$0xff]
  %v156 = vld [vmem:[%s3 + $0x68] sm:$0xff]
  %v157 = vld [vmem:[%s3 + $0x70] sm:$0xff]
  %v158 = vld [vmem:[%s3 + $0x78] sm:$0xff]
  %v159 = vld [vmem:[%s4] sm:$0x1]
  %v161 = vperm.slane %v159, 0
  %163 = vmatpush.msra.mxu0 %v158
  %164 = vmatpush.msra.mxu0 %v157
  %165 = vmatpush.msra.mxu0 %v156
  %166 = vmatpush.msra.mxu0 %v155
  %167 = vmatpush.msra.mxu0 %v154
  %168 = vmatpush.msra.mxu0 %v153
  %169 = vmatpush.msra.mxu0 %v152
  %170 = vmatpush.msra.mxu0 %v151
  %171 = vmatpush.msra.mxu0 %v150
  %172 = vmatpush.msra.mxu0 %v149
  %173 = vmatpush.msra.mxu0 %v148
  %174 = vmatpush.msra.mxu0 %v147
  %175 = vmatpush.msra.mxu0 %v146
  %176 = vmatpush.msra.mxu0 %v145
  %177 = vmatpush.msra.mxu0 %v144
  %178 = vmatpush.msra.mxu0 %v143
  %179 = vmatmul.f32.gmra.mxu0 %v139
  %v180 = vpop.f32.mrf.mxu0
  %v181 = vadd.f32 %v161, %v180
  %182 = vmatmul.f32.gmra.mxu0 %v140
  %v183 = vpop.f32.mrf.mxu0
  %v184 = vadd.f32 %v161, %v183
  %185 = vmatmul.f32.gmra.mxu0 %v141
  %v186 = vpop.f32.mrf.mxu0
  %v187 = vadd.f32 %v161, %v186
  %188 = vmatmul.f32.gmra.mxu0 %v142
  %v189 = vpop.f32.mrf.mxu0
  %v190 = vadd.f32 %v161, %v189
  %191 = vdwg.mxu0
  %192 = vst [vmem:[%s9] sm:$0xff] %v181
  %193 = vst [vmem:[%s9 + $0x8] sm:$0xff] %v184
  %194 = vst [vmem:[%s9 + $0x10] sm:$0xff] %v187
  %195 = vst [vmem:[%s9 + $0x18] sm:$0xff] %v190
  %v196 = vld [vmem:[%s5] sm:$0xff]
  %v197 = vld [vmem:[%s5 + $0x8] sm:$0xff]
  %v198 = vld [vmem:[%s5 + $0x10] sm:$0xff]
  %v199 = vld [vmem:[%s5 + $0x18] sm:$0xff]
  %v200 = vld [vmem:[%s5 + $0x20] sm:$0xff]
  %v201 = vld [vmem:[%s5 + $0x28] sm:$0xff]
  %v202 = vld [vmem:[%s5 + $0x30] sm:$0xff]
  %v203 = vld [vmem:[%s5 + $0x38] sm:$0xff]
  %v204 = vld [vmem:[%s5 + $0x40] sm:$0xff]
  %v205 = vld [vmem:[%s5 + $0x48] sm:$0xff]
  %v206 = vld [vmem:[%s5 + $0x50] sm:$0xff]
  %v207 = vld [vmem:[%s5 + $0x58] sm:$0xff]
  %v208 = vld [vmem:[%s5 + $0x60] sm:$0xff]
  %v209 = vld [vmem:[%s5 + $0x68] sm:$0xff]
  %v210 = vld [vmem:[%s5 + $0x70] sm:$0xff]
  %v211 = vld [vmem:[%s5 + $0x78] sm:$0xff]
  %v212 = vld [vmem:[%s6] sm:$0x1]
  %v214 = vperm.slane %v212, 0
  %216 = vmatpush.msra.mxu0 %v211
  %217 = vmatpush.msra.mxu0 %v210
  %218 = vmatpush.msra.mxu0 %v209
  %219 = vmatpush.msra.mxu0 %v208
  %220 = vmatpush.msra.mxu0 %v207
  %221 = vmatpush.msra.mxu0 %v206
  %222 = vmatpush.msra.mxu0 %v205
  %223 = vmatpush.msra.mxu0 %v204
  %224 = vmatpush.msra.mxu0 %v203
  %225 = vmatpush.msra.mxu0 %v202
  %226 = vmatpush.msra.mxu0 %v201
  %227 = vmatpush.msra.mxu0 %v200
  %228 = vmatpush.msra.mxu0 %v199
  %229 = vmatpush.msra.mxu0 %v198
  %230 = vmatpush.msra.mxu0 %v197
  %231 = vmatpush.msra.mxu0 %v196
  %232 = vmatmul.f32.gmra.mxu0 %v139
  %v233 = vpop.f32.mrf.mxu0
  %v234 = vadd.f32 %v214, %v233
  %235 = vmatmul.f32.gmra.mxu0 %v140
  %v236 = vpop.f32.mrf.mxu0
  %v237 = vadd.f32 %v214, %v236
  %238 = vmatmul.f32.gmra.mxu0 %v141
  %v239 = vpop.f32.mrf.mxu0
  %v240 = vadd.f32 %v214, %v239
  %241 = vmatmul.f32.gmra.mxu0 %v142
  %v242 = vpop.f32.mrf.mxu0
  %v243 = vadd.f32 %v214, %v242
  %244 = vdwg.mxu0
  %245 = vst [vmem:[%s10] sm:$0xff] %v234
  %246 = vst [vmem:[%s10 + $0x8] sm:$0xff] %v237
  %247 = vst [vmem:[%s10 + $0x10] sm:$0xff] %v240
  %248 = vst [vmem:[%s10 + $0x18] sm:$0xff] %v243
  %v249 = vld [vmem:[%s7] sm:$0xff]
  %v250 = vld [vmem:[%s7 + $0x8] sm:$0xff]
  %v251 = vld [vmem:[%s7 + $0x10] sm:$0xff]
  %v252 = vld [vmem:[%s7 + $0x18] sm:$0xff]
  %v253 = vld [vmem:[%s7 + $0x20] sm:$0xff]
  %v254 = vld [vmem:[%s7 + $0x28] sm:$0xff]
  %v255 = vld [vmem:[%s7 + $0x30] sm:$0xff]
  %v256 = vld [vmem:[%s7 + $0x38] sm:$0xff]
  %v257 = vld [vmem:[%s7 + $0x40] sm:$0xff]
  %v258 = vld [vmem:[%s7 + $0x48] sm:$0xff]
  %v259 = vld [vmem:[%s7 + $0x50] sm:$0xff]
  %v260 = vld [vmem:[%s7 + $0x58] sm:$0xff]
  %v261 = vld [vmem:[%s7 + $0x60] sm:$0xff]
  %v262 = vld [vmem:[%s7 + $0x68] sm:$0xff]
  %v263 = vld [vmem:[%s7 + $0x70] sm:$0xff]
  %v264 = vld [vmem:[%s7 + $0x78] sm:$0xff]
  %v265 = vld [vmem:[%s8] sm:$0x1]
  %v267 = vperm.slane %v265, 0
  %269 = vmatpush.msra.mxu0 %v264
  %270 = vmatpush.msra.mxu0 %v263
  %271 = vmatpush.msra.mxu0 %v262
  %272 = vmatpush.msra.mxu0 %v261
  %273 = vmatpush.msra.mxu0 %v260
  %274 = vmatpush.msra.mxu0 %v259
  %275 = vmatpush.msra.mxu0 %v258
  %276 = vmatpush.msra.mxu0 %v257
  %277 = vmatpush.msra.mxu0 %v256
  %278 = vmatpush.msra.mxu0 %v255
  %279 = vmatpush.msra.mxu0 %v254
  %280 = vmatpush.msra.mxu0 %v253
  %281 = vmatpush.msra.mxu0 %v252
  %282 = vmatpush.msra.mxu0 %v251
  %283 = vmatpush.msra.mxu0 %v250
  %284 = vmatpush.msra.mxu0 %v249
  %285 = vmatmul.f32.gmra.mxu0 %v139
  %v286 = vpop.f32.mrf.mxu0
  %v287 = vadd.f32 %v267, %v286
  %288 = vmatmul.f32.gmra.mxu0 %v140
  %v289 = vpop.f32.mrf.mxu0
  %v290 = vadd.f32 %v267, %v289
  %291 = vmatmul.f32.gmra.mxu0 %v141
  %v292 = vpop.f32.mrf.mxu0
  %v293 = vadd.f32 %v267, %v292
  %294 = vmatmul.f32.gmra.mxu0 %v142
  %v295 = vpop.f32.mrf.mxu0
  %v296 = vadd.f32 %v267, %v295
  %297 = vdwg.mxu0
  %298 = vst [vmem:[%s11] sm:$0xff] %v287
  %299 = vst [vmem:[%s11 + $0x8] sm:$0xff] %v290
  %300 = vst [vmem:[%s11 + $0x10] sm:$0xff] %v293
  %301 = vst [vmem:[%s11 + $0x18] sm:$0xff] %v296
  // Predicated region
  $region38: #{block_forward.4} parent=0 // pred_check
    _
  $region39: #{block_forward.4} parent=0 // pred_check_branch
    %303 = sbr.rel (0) target = $region41
  $region40: #{block_forward.4} parent=0 // pred_region
    _
  $region41: #{block_forward.4} parent=0 // pred_fallthru
    _
  // Predicated region
  $region42: #{block_forward.4} parent=0 // pred_check
    _
  $region43: #{block_forward.4} parent=0 // pred_check_branch
    %305 = sbr.rel (0) target = $region45
  $region44: #{block_forward.4} parent=0 // pred_region
    _
  $region45: #{block_forward.4} parent=0 // pred_fallthru
    _
  // Predicated region
  $region46: #{block_forward.4} parent=0 // pred_check
    _
  $region47: #{block_forward.4} parent=0 // pred_check_branch
    %307 = sbr.rel (0) target = $region49
  $region48: #{block_forward.4} parent=0 // pred_region
    _
  $region49: #{block_forward.4} parent=0 // pred_fallthru
    _
  // Predicated region
  $region50: #{block_forward.4} parent=0 // pred_check
    _
  $region51: #{block_forward.4} parent=0 // pred_check_branch
    %309 = sbr.rel (0) target = $region53
  $region52: #{block_forward.4} parent=0 // pred_region
    _
  $region53: #{block_forward.4} parent=0 // pred_fallthru
    _
  // Predicated region
  $region54: #{block_forward.4} parent=0 // pred_check
    _
  $region55: #{block_forward.4} parent=0 // pred_check_branch
    %311 = sbr.rel (0) target = $region57
  $region56: #{block_forward.4} parent=0 // pred_region
    _
  $region57: #{block_forward.4} parent=0 // pred_fallthru
    _
  // Predicated region
  $region58: #{block_forward.4} parent=0 // pred_check
    _
  $region59: #{block_forward.4} parent=0 // pred_check_branch
    %313 = sbr.rel (0) target = $region61
  $region60: #{block_forward.4} parent=0 // pred_region
    _
  $region61: #{block_forward.4} parent=0 // pred_fallthru
    _

// kernel: block_forward.5
$region0: #{block_forward.5}
  #allocation0 [shape = 'u32[]', space=smem, size = 0x4, offset = 0x4, fixed_abs, tag = 'smem constant byte address 0x4 - core index']
  #allocation1 [shape = 'u32[72,128]{1,0:T(1,128)}', space=vmem, size = 0x9000, scoped, tag = 'internal scratch']
  %s0 = inlined_call_operand.vmem [shape: f32[2,4,16,16], index: 0, kind: input, shape index: {}]
  %s1 = inlined_call_operand.vmem [shape: f32[2,4,16,16], index: 1, kind: input, shape index: {}]
  %s2 = inlined_call_operand.vmem [shape: f32[2,4,16,16], index: 2, kind: input, shape index: {}]
  %s3 = inlined_call_operand.vmem [shape: f32[2,4,16,16], index: 3, kind: output, shape index: {}]
  %s4 = sld [smem:[#allocation0]]
  $region45: #{block_forward.5} parent=0
    _
  %s6 = ssub.s32 1, %s4
  %s7 = scalar_select 0, %s6, %s4
  loop: start=0, step=1, limit=10
  $region2: #{block_forward.5} parent=0 // loop_pre_header
    _
  $region3: #{block_forward.5} parent=0 // loop_header
    %s9 = sphi 0, %s13
    %p10 = scmp.ge.s32.totalorder %s9, 10
    %s16 = sphi 0, %s28
    %s17 = sphi 0, %s24
    %s18 = sphi 0, %s16
    %s19 = sphi 0, %s17
    %s20 = sphi 0, %s18
    %s21 = sphi 0, %s19
    %s33 = sphi 0, %s35
    %s36 = sphi 0, %s33
    %s37 = sphi 0, %s36
    %s53 = sphi 0, %s37
    %s61 = sphi 0, %s63
    %s64 = sphi 0, %s61
    %s65 = sphi 0, %s64
    %s81 = sphi 0, %s65
    %s89 = sphi 0, %s91
    %s92 = sphi 0, %s89
    %s93 = sphi 0, %s92
    %s109 = sphi 0, %s93
    %s117 = sphi 0, %s119
    %s120 = sphi 0, %s117
    %s121 = sphi 0, %s120
    %s137 = sphi 0, %s121
  $region4: #{block_forward.5} parent=0 // loop_header_branch
    %12 = sbr.rel (%p10) target = $region8
  $region5: #{block_forward.5} parent=0 // loop_body
    %s14 = ssub.s32 %s9, 1
    %s15 = ssub.s32 %s9, 2
    %s22 = sadd.s32 1, %s17
    %p23 = scmp.ge.s32.totalorder %s22, 4
    %s24 = scalar_select %p23, 0, %s22
    %s25 = sadd.s32 1, %s16
    %s26 = scalar_select %p23, %s25, %s16
    %p27 = scmp.ge.s32.totalorder %s26, 2
    %s28 = scalar_select %p27, 0, %s26
    %s29 = ssub.s32 %s16, %s28
    %s30 = ssub.s32 %s17, %s24
    %s31 = sor.u32 %s29, %s30
    %p32 = scmp.eq.s32.totalorder %s31, 0
    %s34 = sadd.s32 %s33, 1
    %s35 = scalar_select %p32, %s33, %s34
    %p38 = pneg %p32
    %p39 = scmp.eq.s32.totalorder %s9, 7
    %p40 = por %p38, %p39
    %p41 = scmp.ne.s32.totalorder %s33, %s36
    %p42 = scmp.eq.s32.totalorder %s9, 0
    %p43 = por %p41, %p42
    %p44 = scmp.ne.s32.totalorder %s33, %s36
    %p45 = scmp.eq.s32.totalorder %s14, 7
    %p46 = por %p44, %p45
    %p47 = scmp.ne.s32.totalorder %s36, %s37
    %p48 = scmp.eq.s32.totalorder %s14, 0
    %p49 = por %p47, %p48
    %p50 = scmp.ne.s32.totalorder %s36, %s37
    %p51 = scmp.eq.s32.totalorder %s15, 7
    %p52 = por %p50, %p51
    %p54 = scmp.ne.s32.totalorder %s37, %s53
    %p55 = scmp.eq.s32.totalorder %s15, 0
    %p56 = por %p54, %p55
    %s57 = ssub.s32 %s16, %s28
    %s58 = ssub.s32 %s17, %s24
    %s59 = sor.u32 %s57, %s58
    %p60 = scmp.eq.s32.totalorder %s59, 0
    %s62 = sadd.s32 %s61, 1
    %s63 = scalar_select %p60, %s61, %s62
    %p66 = pneg %p60
    %p67 = scmp.eq.s32.totalorder %s9, 7
    %p68 = por %p66, %p67
    %p69 = scmp.ne.s32.totalorder %s61, %s64
    %p70 = scmp.eq.s32.totalorder %s9, 0
    %p71 = por %p69, %p70
    %p72 = scmp.ne.s32.totalorder %s61, %s64
    %p73 = scmp.eq.s32.totalorder %s14, 7
    %p74 = por %p72, %p73
    %p75 = scmp.ne.s32.totalorder %s64, %s65
    %p76 = scmp.eq.s32.totalorder %s14, 0
    %p77 = por %p75, %p76
    %p78 = scmp.ne.s32.totalorder %s64, %s65
    %p79 = scmp.eq.s32.totalorder %s15, 7
    %p80 = por %p78, %p79
    %p82 = scmp.ne.s32.totalorder %s65, %s81
    %p83 = scmp.eq.s32.totalorder %s15, 0
    %p84 = por %p82, %p83
    %s85 = ssub.s32 %s16, %s28
    %s86 = ssub.s32 %s17, %s24
    %s87 = sor.u32 %s85, %s86
    %p88 = scmp.eq.s32.totalorder %s87, 0
    %s90 = sadd.s32 %s89, 1
    %s91 = scalar_select %p88, %s89, %s90
    %p94 = pneg %p88
    %p95 = scmp.eq.s32.totalorder %s9, 7
    %p96 = por %p94, %p95
    %p97 = scmp.ne.s32.totalorder %s89, %s92
    %p98 = scmp.eq.s32.totalorder %s9, 0
    %p99 = por %p97, %p98
    %p100 = scmp.ne.s32.totalorder %s89, %s92
    %p101 = scmp.eq.s32.totalorder %s14, 7
    %p102 = por %p100, %p101
    %p103 = scmp.ne.s32.totalorder %s92, %s93
    %p104 = scmp.eq.s32.totalorder %s14, 0
    %p105 = por %p103, %p104
    %p106 = scmp.ne.s32.totalorder %s92, %s93
    %p107 = scmp.eq.s32.totalorder %s15, 7
    %p108 = por %p106, %p107
    %p110 = scmp.ne.s32.totalorder %s93, %s109
    %p111 = scmp.eq.s32.totalorder %s15, 0
    %p112 = por %p110, %p111
    %s113 = ssub.s32 %s16, %s28
    %s114 = ssub.s32 %s17, %s24
    %s115 = sor.u32 %s113, %s114
    %p116 = scmp.eq.s32.totalorder %s115, 0
    %s118 = sadd.s32 %s117, 1
    %s119 = scalar_select %p116, %s117, %s118
    %p122 = pneg %p116
    %p123 = scmp.eq.s32.totalorder %s9, 7
    %p124 = por %p122, %p123
    %p125 = scmp.ne.s32.totalorder %s117, %s120
    %p126 = scmp.eq.s32.totalorder %s9, 0
    %p127 = por %p125, %p126
    %p128 = scmp.ne.s32.totalorder %s117, %s120
    %p129 = scmp.eq.s32.totalorder %s14, 7
    %p130 = por %p128, %p129
    %p131 = scmp.ne.s32.totalorder %s120, %s121
    %p132 = scmp.eq.s32.totalorder %s14, 0
    %p133 = por %p131, %p132
    %p134 = scmp.ne.s32.totalorder %s120, %s121
    %p135 = scmp.eq.s32.totalorder %s15, 7
    %p136 = por %p134, %p135
    %p138 = scmp.ne.s32.totalorder %s121, %s137
    %p139 = scmp.eq.s32.totalorder %s15, 0
    %p140 = por %p138, %p139
    %p141 = scmp.le.s32.totalorder 1, %s9
    %p142 = scmp.lt.s32.totalorder %s9, 9
    %p143 = pnand %p141, %p142
    %p144 = pneg %p143
    // Predicated region
    $region9: #{block_forward.5} parent=5 // pred_check
      _
    $region10: #{block_forward.5} parent=5 // pred_check_branch
      %146 = sbr.rel (%p143) target = $region12
    $region11: #{block_forward.5} parent=5 // pred_region
      %s147 = ssub.s32 %s9, 1
    $region12: #{block_forward.5} parent=5 // pred_fallthru
      _
    %p148 = scmp.lt.s32.totalorder %s9, 8
    // Predicated region
    $region13: #{block_forward.5} parent=5 // pred_check
      %p149 = pneg %p148
    $region14: #{block_forward.5} parent=5 // pred_check_branch
      %151 = sbr.rel (%p149) target = $region16
    $region15: #{block_forward.5} parent=5 // pred_region
      // Predicated region
      $region17: #{block_forward.5} parent=15 // pred_check
        %p152 = pneg %p43
      $region18: #{block_forward.5} parent=15 // pred_check_branch
        %154 = sbr.rel (%p152) target = $region20
      $region19: #{block_forward.5} parent=15 // pred_region
        %p155 = scmp.lt.s32.totalorder %s16, 1
        %s156 = scalar_select %p155, %s16, 1
        %p157 = scmp.lt.s32.totalorder %s17, 3
        %s158 = scalar_select %p157, %s17, 3
        %s159 = smul.addr %s158, 2
        %s160 = smul.addr %s156, 8
        %s161 = sadd.s32 %s159, %s160
        %s162 = smul.addr %s161, 8
        %s163 = scalar_lea.vmem %s0, %s162
      $region20: #{block_forward.5} parent=15 // pred_fallthru
        _
      // Predicated region
      $region21: #{block_forward.5} parent=15 // pred_check
        %p164 = pneg %p71
      $region22: #{block_forward.5} parent=15 // pred_check_branch
        %166 = sbr.rel (%p164) target = $region24
      $region23: #{block_forward.5} parent=15 // pred_region
        %p167 = scmp.lt.s32.totalorder %s16, 1
        %s168 = scalar_select %p167, %s16, 1
        %p169 = scmp.lt.s32.totalorder %s17, 3
        %s170 = scalar_select %p169, %s17, 3
        %s171 = smul.addr %s170, 2
        %s172 = smul.addr %s168, 8
        %s173 = sadd.s32 %s171, %s172
        %s174 = smul.addr %s173, 8
        %s175 = scalar_lea.vmem %s1, %s174
      $region24: #{block_forward.5} parent=15 // pred_fallthru
        _
      // Predicated region
      $region25: #{block_forward.5} parent=15 // pred_check
        %p176 = pneg %p99
      $region26: #{block_forward.5} parent=15 // pred_check_branch
        %178 = sbr.rel (%p176) target = $region28
      $region27: #{block_forward.5} parent=15 // pred_region
        %p179 = scmp.lt.s32.totalorder %s16, 1
        %s180 = scalar_select %p179, %s16, 1
        %p181 = scmp.lt.s32.totalorder %s17, 3
        %s182 = scalar_select %p181, %s17, 3
        %s183 = smul.addr %s182, 2
        %s184 = smul.addr %s180, 8
        %s185 = sadd.s32 %s183, %s184
        %s186 = smul.addr %s185, 8
        %s187 = scalar_lea.vmem %s2, %s186
      $region28: #{block_forward.5} parent=15 // pred_fallthru
        _
    $region16: #{block_forward.5} parent=5 // pred_fallthru
      _
    %p188 = scmp.le.s32.totalorder 1, %s9
    %p189 = scmp.lt.s32.totalorder %s9, 9
    %p190 = pnand %p188, %p189
    %p191 = pneg %p190
    // Predicated region
    $region29: #{block_forward.5} parent=5 // pred_check
      _
    $region30: #{block_forward.5} parent=5 // pred_check_branch
      %193 = sbr.rel (%p190) target = $region32
    $region31: #{block_forward.5} parent=5 // pred_region
      %s194 = ssub.s32 %s9, 1
      %p195 = scmp.lt.s32.totalorder %s18, 1
      %s196 = scalar_select %p195, %s18, 1
      %p197 = scmp.lt.s32.totalorder %s19, 3
      %s198 = scalar_select %p197, %s19, 3
      %s199 = smul.addr %s198, 2
      %s200 = smul.addr %s196, 8
      %s201 = sadd.s32 %s199, %s200
      %s202 = smul.addr %s201, 8
      %s203 = scalar_lea.vmem %s0, %s202
      %p204 = pneg %p49
      %p205 = pneg %p46
      %p206 = scmp.lt.s32.totalorder %s18, 1
      %s207 = scalar_select %p206, %s18, 1
      %p208 = scmp.lt.s32.totalorder %s19, 3
      %s209 = scalar_select %p208, %s19, 3
      %s210 = smul.addr %s209, 2
      %s211 = smul.addr %s207, 8
      %s212 = sadd.s32 %s210, %s211
      %s213 = smul.addr %s212, 8
      %s214 = scalar_lea.vmem %s1, %s213
      %p215 = pneg %p77
      %p216 = pneg %p74
      %p217 = scmp.lt.s32.totalorder %s18, 1
      %s218 = scalar_select %p217, %s18, 1
      %p219 = scmp.lt.s32.totalorder %s19, 3
      %s220 = scalar_select %p219, %s19, 3
      %s221 = smul.addr %s220, 2
      %s222 = smul.addr %s218, 8
      %s223 = sadd.s32 %s221, %s222
      %s224 = smul.addr %s223, 8
      %s225 = scalar_lea.vmem %s2, %s224
      %p226 = pneg %p105
      %p227 = pneg %p102
      %p228 = pneg %p133
      %p229 = pneg %p130
      %p230 = scmp.lt.s32.totalorder %s18, 1
      %s231 = scalar_select %p230, %s18, 1
      %p232 = scmp.lt.s32.totalorder %s19, 3
      %s233 = scalar_select %p232, %s19, 3
      %s234 = smul.addr %s233, 2
      %s235 = smul.addr %s231, 8
      %s236 = sadd.s32 %s234, %s235
      %s237 = smul.addr %s236, 8
      %s238 = scalar_lea.vmem %s3, %s237
      %p239 = scmp.lt.s32.totalorder %s18, 1
      %s240 = scalar_select %p239, %s18, 1
      %p241 = scmp.lt.s32.totalorder %s19, 3
      %s242 = scalar_select %p241, %s19, 3
      %s243 = smul.addr %s242, 2
      %s244 = smul.addr %s240, 8
      %s245 = sadd.s32 %s243, %s244
      %s246 = smul.addr %s245, 8
      %s247 = scalar_lea.vmem %s0, %s246
      %p248 = scmp.lt.s32.totalorder %s18, 1
      %s249 = scalar_select %p248, %s18, 1
      %p250 = scmp.lt.s32.totalorder %s19, 3
      %s251 = scalar_select %p250, %s19, 3
      %s252 = smul.addr %s251, 2
      %s253 = smul.addr %s249, 8
      %s254 = sadd.s32 %s252, %s253
      %s255 = smul.addr %s254, 8
      %s256 = scalar_lea.vmem %s1, %s255
      %p257 = scmp.lt.s32.totalorder %s18, 1
      %s258 = scalar_select %p257, %s18, 1
      %p259 = scmp.lt.s32.totalorder %s19, 3
      %s260 = scalar_select %p259, %s19, 3
      %s261 = smul.addr %s260, 2
      %s262 = smul.addr %s258, 8
      %s263 = sadd.s32 %s261, %s262
      %s264 = smul.addr %s263, 8
      %s265 = scalar_lea.vmem %s2, %s264
      %p266 = scmp.lt.s32.totalorder %s18, 1
      %s267 = scalar_select %p266, %s18, 1
      %p268 = scmp.lt.s32.totalorder %s19, 3
      %s269 = scalar_select %p268, %s19, 3
      %s270 = smul.addr %s269, 2
      %s271 = smul.addr %s267, 8
      %s272 = sadd.s32 %s270, %s271
      %s273 = smul.addr %s272, 8
      %s274 = scalar_lea.vmem %s3, %s273
      %v275 = vld [vmem:[%s247] sm:$0xff]
      %v276 = vld [vmem:[%s247 + $0x8] sm:$0xff]
      %v277 = vmul.f32 %v275, 0.25
      %v278 = vmul.f32 %v276, 0.25
      %v279 = vld [vmem:[%s256] sm:$0xff]
      %v280 = vld [vmem:[%s256 + $0x8] sm:$0xff]
      %vm281 = vcmask 130048
      %v283 = vsel %vm281, %v277, 0
      %v286 = vsel %vm281, %v278, 0
      %v289 = vsel %vm281, %v279, 0
      %v292 = vsel %vm281, %v280, 0
      %294 = vmatpush.xpose.msra.mxu0 0.0
      %295 = vmatpush.xpose.msra.mxu0 0.0
      %296 = vmatpush.xpose.msra.mxu0 0.0
      %297 = vmatpush.xpose.msra.mxu0 0.0
      %298 = vmatpush.xpose.msra.mxu0 0.0
      %299 = vmatpush.xpose.msra.mxu0 0.0
      %300 = vmatpush.xpose.msra.mxu0 0.0
      %301 = vmatpush.xpose.msra.mxu0 0.0
      %302 = vmatpush.xpose.msra.mxu0 0.0
      %303 = vmatpush.xpose.msra.mxu0 0.0
      %304 = vmatpush.xpose.msra.mxu0 0.0
      %305 = vmatpush.xpose.msra.mxu0 0.0
      %306 = vmatpush.xpose.msra.mxu0 0.0
      %307 = vmatpush.xpose.msra.mxu0 0.0
      %308 = vmatpush.xpose.msra.mxu0 %v292
      %309 = vmatpush.xpose.msra.mxu0 %v289
      %310 = vmatmul.f32.gmra.mxu0 %v283
      %v311 = vpop.f32.mrf.mxu0
      %v312 = vadd.f32 0.0, %v311
      %313 = vmatmul.f32.gmra.mxu0 %v286
      %v314 = vpop.f32.mrf.mxu0
      %v315 = vadd.f32 0.0, %v314
      %316 = vdwg.mxu0
      %v317 = vsel %vm281, %v312, -inf
      %318 = vmax.xlane.f32.xlu0 %v317
      %v319 = vpop.xlane.xlu0 %318
      %v320 = vsel %vm281, %v315, -inf
      %321 = vmax.xlane.f32.xlu0 %v320
      %v322 = vpop.xlane.xlu0 %321
      %v323 = vsub.f32 %v312, %v319
      %v324 = vsub.f32 %v315, %v322
      %v325 = vmul.f32 %v323, 1.442695
      %v326 = vpow.pop %v325
      %v327 = vmul.f32 %v324, 1.442695
      %v328 = vpow.pop %v327
      %v329 = vsel %vm281, %v326, 0.0
      %330 = vadd.xlane.f32.xlu0 %v329
      %v331 = vpop.xlane.xlu0 %330
      %v332 = vsel %vm281, %v328, 0.0
      %333 = vadd.xlane.f32.xlu0 %v332
      %v334 = vpop.xlane.xlu0 %333
      %v335 = vld [vmem:[%s265] sm:$0xff]
      %v336 = vld [vmem:[%s265 + $0x8] sm:$0xff]
      %v338 = vsel %vm281, %v326, 0
      %v341 = vsel %vm281, %v328, 0
      %343 = vmatpush.msra.mxu0 0.0
      %344 = vmatpush.msra.mxu0 0.0
      %345 = vmatpush.msra.mxu0 0.0
      %346 = vmatpush.msra.mxu0 0.0
      %347 = vmatpush.msra.mxu0 0.0
      %348 = vmatpush.msra.mxu0 0.0
      %349 = vmatpush.msra.mxu0 0.0
      %350 = vmatpush.msra.mxu0 0.0
      %351 = vmatpush.msra.mxu0 0.0
      %352 = vmatpush.msra.mxu0 0.0
      %353 = vmatpush.msra.mxu0 0.0
      %354 = vmatpush.msra.mxu0 0.0
      %355 = vmatpush.msra.mxu0 0.0
      %356 = vmatpush.msra.mxu0 0.0
      %357 = vmatpush.msra.mxu0 %v336
      %358 = vmatpush.msra.mxu0 %v335
      %359 = vmatmul.f32.gmra.mxu0 %v338
      %v360 = vpop.f32.mrf.mxu0
      %v361 = vadd.f32 0.0, %v360
      %362 = vmatmul.f32.gmra.mxu0 %v341
      %v363 = vpop.f32.mrf.mxu0
      %v364 = vadd.f32 0.0, %v363
      %365 = vdwg.mxu0
      %v366 = vrcp.pop %v331
      %v367 = vmul.f32 %v331, %v366
      %v368 = vsub.f32 1.0, %v367
      %v369 = vmul.f32 %v366, %v368
      %v370 = vadd.f32 %v366, %v369
      %vm371 = vweird.f32 %v331
      %vm372 = vweird.f32 %v366
      %vm373 = vmor %vm371, %vm372
      %v374 = vsel %vm373, %v366, %v370
      %v375 = vand.u32 2147483647, %v331
      %vm376 = vcmp.eq.f32.partialorder %v375, 8.507059e+37
      %v377 = vand.u32 %v331, 2147483648
      %v378 = vor.u32 1.1754944e-38, %v377
      %v379 = vsel %vm376, %v378, %v374
      %v380 = vmul.f32 %v361, %v379
      %v381 = vrcp.pop %v334
      %v382 = vmul.f32 %v334, %v381
      %v383 = vsub.f32 1.0, %v382
      %v384 = vmul.f32 %v381, %v383
      %v385 = vadd.f32 %v381, %v384
      %vm386 = vweird.f32 %v334
      %vm387 = vweird.f32 %v381
      %vm388 = vmor %vm386, %vm387
      %v389 = vsel %vm388, %v381, %v385
      %v390 = vand.u32 2147483647, %v334
      %vm391 = vcmp.eq.f32.partialorder %v390, 8.507059e+37
      %v392 = vand.u32 %v334, 2147483648
      %v393 = vor.u32 1.1754944e-38, %v392
      %v394 = vsel %vm391, %v393, %v389
      %v395 = vmul.f32 %v364, %v394
      %396 = vst.msk [vmem:[%s274] sm:$0xff] %vm281, %v380
      %397 = vst.msk [vmem:[%s274 + $0x8] sm:$0xff] %vm281, %v395
      %p398 = scmp.lt.s32.totalorder %s18, 1
      %s399 = scalar_select %p398, %s18, 1
      %p400 = scmp.lt.s32.totalorder %s19, 3
      %s401 = scalar_select %p400, %s19, 3
      %s402 = smul.addr %s401, 2
      %s403 = smul.addr %s399, 8
      %s404 = sadd.s32 %s402, %s403
      %s405 = smul.addr %s404, 8
      %s406 = scalar_lea.vmem %s3, %s405
      // Predicated region
      $region33: #{block_forward.5} parent=31 // pred_check
        %p407 = pneg %p130
      $region34: #{block_forward.5} parent=31 // pred_check_branch
        %409 = sbr.rel (%p407) target = $region36
      $region35: #{block_forward.5} parent=31 // pred_region
        _
      $region36: #{block_forward.5} parent=31 // pred_fallthru
        _
    $region32: #{block_forward.5} parent=5 // pred_fallthru
      _
    %p410 = scmp.le.s32.totalorder 2, %s9
    // Predicated region
    $region37: #{block_forward.5} parent=5 // pred_check
      %p411 = pneg %p410
    $region38: #{block_forward.5} parent=5 // pred_check_branch
      %413 = sbr.rel (%p411) target = $region40
    $region39: #{block_forward.5} parent=5 // pred_region
      %s414 = ssub.s32 %s9, 2
      // Predicated region
      $region41: #{block_forward.5} parent=39 // pred_check
        %p415 = pneg %p136
      $region42: #{block_forward.5} parent=39 // pred_check_branch
        %417 = sbr.rel (%p415) target = $region44
      $region43: #{block_forward.5} parent=39 // pred_region
        %p418 = scmp.lt.s32.totalorder %s20, 1
        %s419 = scalar_select %p418, %s20, 1
        %p420 = scmp.lt.s32.totalorder %s21, 3
        %s421 = scalar_select %p420, %s21, 3
        %s422 = smul.addr %s421, 2
        %s423 = smul.addr %s419, 8
        %s424 = sadd.s32 %s422, %s423
        %s425 = smul.addr %s424, 8
        %s426 = scalar_lea.vmem %s3, %s425
      $region44: #{block_forward.5} parent=39 // pred_fallthru
        _
    $region40: #{block_forward.5} parent=5 // pred_fallthru
      _
  $region6: #{block_forward.5} parent=0 // loop_footer
    %s13 = sadd.s32 1, %s9
  $region7: #{block_forward.5} parent=0 // loop_footer_branch
    %8 = sbr.rel target = $region3
  $region8: #{block_forward.5} parent=0 // loop_exit
    _

// kernel: block_forward.6
$region0: #{block_forward.6}
  #allocation0 [shape = 'u32[]', space=smem, size = 0x4, offset = 0x4, fixed_abs, tag = 'smem constant byte address 0x4 - core index']
  #allocation1 [shape = 'u32[72,128]{1,0:T(1,128)}', space=vmem, size = 0x9000, scoped, tag = 'internal scratch']
  %s0 = inlined_call_operand.vmem [shape: f32[32,128], index: 0, kind: input, shape index: {}]
  %s1 = inlined_call_operand.vmem [shape: f32[32,128], index: 1, kind: input, shape index: {}]
  %s2 = inlined_call_operand.vmem [shape: f32[128,128], index: 2, kind: input, shape index: {}]
  %s3 = inlined_call_operand.vmem [shape: f32[1,128], index: 3, kind: input, shape index: {}]
  %s4 = inlined_call_operand.vmem [shape: f32[32,128], index: 4, kind: output, shape index: {}]
  %s5 = sld [smem:[#allocation0]]
  $region26: #{block_forward.6} parent=0
    _
  %s7 = ssub.s32 1, %s5
  %s8 = scalar_select 0, %s7, %s5
  // Predicated region
  $region2: #{block_forward.6} parent=0 // pred_check
    _
  $region3: #{block_forward.6} parent=0 // pred_check_branch
    %10 = sbr.rel (0) target = $region5
  $region4: #{block_forward.6} parent=0 // pred_region
    _
  $region5: #{block_forward.6} parent=0 // pred_fallthru
    _
  // Predicated region
  $region6: #{block_forward.6} parent=0 // pred_check
    _
  $region7: #{block_forward.6} parent=0 // pred_check_branch
    %12 = sbr.rel (0) target = $region9
  $region8: #{block_forward.6} parent=0 // pred_region
    _
  $region9: #{block_forward.6} parent=0 // pred_fallthru
    _
  // Predicated region
  $region10: #{block_forward.6} parent=0 // pred_check
    _
  $region11: #{block_forward.6} parent=0 // pred_check_branch
    %14 = sbr.rel (0) target = $region13
  $region12: #{block_forward.6} parent=0 // pred_region
    _
  $region13: #{block_forward.6} parent=0 // pred_fallthru
    _
  // Predicated region
  $region14: #{block_forward.6} parent=0 // pred_check
    _
  $region15: #{block_forward.6} parent=0 // pred_check_branch
    %16 = sbr.rel (0) target = $region17
  $region16: #{block_forward.6} parent=0 // pred_region
    _
  $region17: #{block_forward.6} parent=0 // pred_fallthru
    _
  %v17 = vld [vmem:[%s1] sm:$0xff]
  %v18 = vld [vmem:[%s1 + $0x8] sm:$0xff]
  %v19 = vld [vmem:[%s1 + $0x10] sm:$0xff]
  %v20 = vld [vmem:[%s1 + $0x18] sm:$0xff]
  %v21 = vld [vmem:[%s2] sm:$0xff]
  %v22 = vld [vmem:[%s2 + $0x8] sm:$0xff]
  %v23 = vld [vmem:[%s2 + $0x10] sm:$0xff]
  %v24 = vld [vmem:[%s2 + $0x18] sm:$0xff]
  %v25 = vld [vmem:[%s2 + $0x20] sm:$0xff]
  %v26 = vld [vmem:[%s2 + $0x28] sm:$0xff]
  %v27 = vld [vmem:[%s2 + $0x30] sm:$0xff]
  %v28 = vld [vmem:[%s2 + $0x38] sm:$0xff]
  %v29 = vld [vmem:[%s2 + $0x40] sm:$0xff]
  %v30 = vld [vmem:[%s2 + $0x48] sm:$0xff]
  %v31 = vld [vmem:[%s2 + $0x50] sm:$0xff]
  %v32 = vld [vmem:[%s2 + $0x58] sm:$0xff]
  %v33 = vld [vmem:[%s2 + $0x60] sm:$0xff]
  %v34 = vld [vmem:[%s2 + $0x68] sm:$0xff]
  %v35 = vld [vmem:[%s2 + $0x70] sm:$0xff]
  %v36 = vld [vmem:[%s2 + $0x78] sm:$0xff]
  %v37 = vld [vmem:[%s3] sm:$0x1]
  %v39 = vperm.slane %v37, 0
  %41 = vmatpush.msra.mxu0 %v36
  %42 = vmatpush.msra.mxu0 %v35
  %43 = vmatpush.msra.mxu0 %v34
  %44 = vmatpush.msra.mxu0 %v33
  %45 = vmatpush.msra.mxu0 %v32
  %46 = vmatpush.msra.mxu0 %v31
  %47 = vmatpush.msra.mxu0 %v30
  %48 = vmatpush.msra.mxu0 %v29
  %49 = vmatpush.msra.mxu0 %v28
  %50 = vmatpush.msra.mxu0 %v27
  %51 = vmatpush.msra.mxu0 %v26
  %52 = vmatpush.msra.mxu0 %v25
  %53 = vmatpush.msra.mxu0 %v24
  %54 = vmatpush.msra.mxu0 %v23
  %55 = vmatpush.msra.mxu0 %v22
  %56 = vmatpush.msra.mxu0 %v21
  %57 = vmatmul.f32.gmra.mxu0 %v17
  %v58 = vpop.f32.mrf.mxu0
  %v59 = vadd.f32 %v39, %v58
  %60 = vmatmul.f32.gmra.mxu0 %v18
  %v61 = vpop.f32.mrf.mxu0
  %v62 = vadd.f32 %v39, %v61
  %63 = vmatmul.f32.gmra.mxu0 %v19
  %v64 = vpop.f32.mrf.mxu0
  %v65 = vadd.f32 %v39, %v64
  %66 = vmatmul.f32.gmra.mxu0 %v20
  %v67 = vpop.f32.mrf.mxu0
  %v68 = vadd.f32 %v39, %v67
  %69 = vdwg.mxu0
  %v70 = vld [vmem:[%s0] sm:$0xff]
  %v71 = vld [vmem:[%s0 + $0x8] sm:$0xff]
  %v72 = vld [vmem:[%s0 + $0x10] sm:$0xff]
  %v73 = vld [vmem:[%s0 + $0x18] sm:$0xff]
  %v74 = vadd.f32 %v59, %v70
  %v75 = vadd.f32 %v62, %v71
  %v76 = vadd.f32 %v65, %v72
  %v77 = vadd.f32 %v68, %v73
  %78 = vst [vmem:[%s4] sm:$0xff] %v74
  %79 = vst [vmem:[%s4 + $0x8] sm:$0xff] %v75
  %80 = vst [vmem:[%s4 + $0x10] sm:$0xff] %v76
  %81 = vst [vmem:[%s4 + $0x18] sm:$0xff] %v77
  // Predicated region
  $region18: #{block_forward.6} parent=0 // pred_check
    _
  $region19: #{block_forward.6} parent=0 // pred_check_branch
    %83 = sbr.rel (0) target = $region21
  $region20: #{block_forward.6} parent=0 // pred_region
    _
  $region21: #{block_forward.6} parent=0 // pred_fallthru
    _
  // Predicated region
  $region22: #{block_forward.6} parent=0 // pred_check
    _
  $region23: #{block_forward.6} parent=0 // pred_check_branch
    %85 = sbr.rel (0) target = $region25
  $region24: #{block_forward.6} parent=0 // pred_region
    _
  $region25: #{block_forward.6} parent=0 // pred_fallthru
    _

// kernel: block_forward.7
$region0: #{block_forward.7}
  #allocation0 [shape = 'u32[]', space=smem, size = 0x4, offset = 0x4, fixed_abs, tag = 'smem constant byte address 0x4 - core index']
  #allocation1 [shape = 'u32[72,128]{1,0:T(1,128)}', space=vmem, size = 0x9000, scoped, tag = 'internal scratch']
  %s0 = inlined_call_operand.vmem [shape: f32[32,128], index: 0, kind: input, shape index: {}]
  %s1 = inlined_call_operand.vmem [shape: f32[1,128], index: 1, kind: input, shape index: {}]
  %s2 = inlined_call_operand.vmem [shape: f32[1,128], index: 2, kind: input, shape index: {}]
  %s3 = inlined_call_operand.vmem [shape: f32[128,256], index: 3, kind: input, shape index: {}]
  %s4 = inlined_call_operand.vmem [shape: f32[1,256], index: 4, kind: input, shape index: {}]
  %s5 = inlined_call_operand.vmem [shape: f32[256,128], index: 5, kind: input, shape index: {}]
  %s6 = inlined_call_operand.vmem [shape: f32[1,128], index: 6, kind: input, shape index: {}]
  %s7 = inlined_call_operand.vmem [shape: f32[128,128], index: 7, kind: input, shape index: {}]
  %s8 = inlined_call_operand.vmem [shape: f32[1,128], index: 8, kind: input, shape index: {}]
  %s9 = inlined_call_operand.vmem [shape: f32[128,128], index: 9, kind: input, shape index: {}]
  %s10 = inlined_call_operand.vmem [shape: f32[1,128], index: 10, kind: input, shape index: {}]
  %s11 = inlined_call_operand.hbm [shape: f32[32,128], index: 11, kind: output, shape index: {}]
  %s12 = sld [smem:[#allocation0]]
  $region54: #{block_forward.7} parent=0
    _
  %s14 = ssub.s32 1, %s12
  %s15 = scalar_select 0, %s14, %s12
  $region1: #{block_forward.7} parent=0
    #allocation2 [shape = 'u8[16384]{0}', space=vmem, size = 0x4000, scoped, tag = 'output window, operand 0, single buffered']
    #allocation3 [shape = 's32[1]{0}', space=sflag, size = 0x4, scoped, tag = 'scoped memory for block_forward.7']
    %16 = vsyncpa [#allocation3], 0
    // Predicated region
    $region2: #{block_forward.7} parent=1 // pred_check
      _
    $region3: #{block_forward.7} parent=1 // pred_check_branch
      %18 = sbr.rel (0) target = $region5
    $region4: #{block_forward.7} parent=1 // pred_region
      _
    $region5: #{block_forward.7} parent=1 // pred_fallthru
      _
    // Predicated region
    $region6: #{block_forward.7} parent=1 // pred_check
      _
    $region7: #{block_forward.7} parent=1 // pred_check_branch
      %20 = sbr.rel (0) target = $region9
    $region8: #{block_forward.7} parent=1 // pred_region
      _
    $region9: #{block_forward.7} parent=1 // pred_fallthru
      _
    // Predicated region
    $region10: #{block_forward.7} parent=1 // pred_check
      _
    $region11: #{block_forward.7} parent=1 // pred_check_branch
      %22 = sbr.rel (0) target = $region13
    $region12: #{block_forward.7} parent=1 // pred_region
      _
    $region13: #{block_forward.7} parent=1 // pred_fallthru
      _
    // Predicated region
    $region14: #{block_forward.7} parent=1 // pred_check
      _
    $region15: #{block_forward.7} parent=1 // pred_check_branch
      %24 = sbr.rel (0) target = $region17
    $region16: #{block_forward.7} parent=1 // pred_region
      _
    $region17: #{block_forward.7} parent=1 // pred_fallthru
      _
    // Predicated region
    $region18: #{block_forward.7} parent=1 // pred_check
      _
    $region19: #{block_forward.7} parent=1 // pred_check_branch
      %26 = sbr.rel (0) target = $region21
    $region20: #{block_forward.7} parent=1 // pred_region
      _
    $region21: #{block_forward.7} parent=1 // pred_fallthru
      _
    // Predicated region
    $region22: #{block_forward.7} parent=1 // pred_check
      _
    $region23: #{block_forward.7} parent=1 // pred_check_branch
      %28 = sbr.rel (0) target = $region25
    $region24: #{block_forward.7} parent=1 // pred_region
      _
    $region25: #{block_forward.7} parent=1 // pred_fallthru
      _
    // Predicated region
    $region26: #{block_forward.7} parent=1 // pred_check
      _
    $region27: #{block_forward.7} parent=1 // pred_check_branch
      %30 = sbr.rel (0) target = $region29
    $region28: #{block_forward.7} parent=1 // pred_region
      _
    $region29: #{block_forward.7} parent=1 // pred_fallthru
      _
    // Predicated region
    $region30: #{block_forward.7} parent=1 // pred_check
      _
    $region31: #{block_forward.7} parent=1 // pred_check_branch
      %32 = sbr.rel (0) target = $region33
    $region32: #{block_forward.7} parent=1 // pred_region
      _
    $region33: #{block_forward.7} parent=1 // pred_fallthru
      _
    // Predicated region
    $region34: #{block_forward.7} parent=1 // pred_check
      _
    $region35: #{block_forward.7} parent=1 // pred_check_branch
      %34 = sbr.rel (0) target = $region37
    $region36: #{block_forward.7} parent=1 // pred_region
      _
    $region37: #{block_forward.7} parent=1 // pred_fallthru
      _
    // Predicated region
    $region38: #{block_forward.7} parent=1 // pred_check
      _
    $region39: #{block_forward.7} parent=1 // pred_check_branch
      %36 = sbr.rel (0) target = $region41
    $region40: #{block_forward.7} parent=1 // pred_region
      _
    $region41: #{block_forward.7} parent=1 // pred_fallthru
      _
    // Predicated region
    $region42: #{block_forward.7} parent=1 // pred_check
      _
    $region43: #{block_forward.7} parent=1 // pred_check_branch
      %38 = sbr.rel (0) target = $region45
    $region44: #{block_forward.7} parent=1 // pred_region
      _
    $region45: #{block_forward.7} parent=1 // pred_fallthru
      _
    %v39 = vld [vmem:[%s0] sm:$0xff]
    %v40 = vld [vmem:[%s0 + $0x8] sm:$0xff]
    %v41 = vld [vmem:[%s0 + $0x10] sm:$0xff]
    %v42 = vld [vmem:[%s0 + $0x18] sm:$0xff]
    %43 = vadd.xlane.f32.xlu0 %v39
    %v44 = vpop.xlane.xlu0 %43
    %45 = vadd.xlane.f32.xlu0 %v40
    %v46 = vpop.xlane.xlu0 %45
    %47 = vadd.xlane.f32.xlu0 %v41
    %v48 = vpop.xlane.xlu0 %47
    %49 = vadd.xlane.f32.xlu0 %v42
    %v50 = vpop.xlane.xlu0 %49
    %v51 = vmul.f32 %v44, 0.015625
    %v52 = vmul.f32 %v46, 0.015625
    %v53 = vmul.f32 %v48, 0.015625
    %v54 = vmul.f32 %v50, 0.015625
    %v55 = vmul.f32 %v39, %v39
    %v56 = vmul.f32 %v40, %v40
    %v57 = vmul.f32 %v41, %v41
    %v58 = vmul.f32 %v42, %v42
    %59 = vadd.xlane.f32.xlu0 %v55
    %v60 = vpop.xlane.xlu0 %59
    %61 = vadd.xlane.f32.xlu0 %v56
    %v62 = vpop.xlane.xlu0 %61
    %63 = vadd.xlane.f32.xlu0 %v57
    %v64 = vpop.xlane.xlu0 %63
    %65 = vadd.xlane.f32.xlu0 %v58
    %v66 = vpop.xlane.xlu0 %65
    %v67 = vmul.f32 %v60, 0.015625
    %v68 = vmul.f32 %v62, 0.015625
    %v69 = vmul.f32 %v64, 0.015625
    %v70 = vmul.f32 %v66, 0.015625
    %v71 = vmul.f32 %v51, %v51
    %v72 = vmul.f32 %v52, %v52
    %v73 = vmul.f32 %v53, %v53
    %v74 = vmul.f32 %v54, %v54
    %v75 = vsub.f32 %v67, %v71
    %v76 = vsub.f32 %v68, %v72
    %v77 = vsub.f32 %v69, %v73
    %v78 = vsub.f32 %v70, %v74
    %v79 = vadd.f32 %v75, 1e-05
    %v80 = vadd.f32 %v76, 1e-05
    %v81 = vadd.f32 %v77, 1e-05
    %v82 = vadd.f32 %v78, 1e-05
    %v83 = vrsqrt.pop %v79
    %v84 = vmul.f32 %v83, %v79
    %v85 = vmul.f32 %v84, %v83
    %v86 = vmul.f32 0.5, %v85
    %v87 = vsub.f32 1.5, %v86
    %v88 = vmul.f32 %v83, %v87
    %vm89 = vweird.f32 %v79
    %vm90 = vweird.f32 %v83
    %vm91 = vmor %vm89, %vm90
    %v92 = vsel %vm91, %v83, %v88
    %v93 = vrsqrt.pop %v80
    %v94 = vmul.f32 %v93, %v80
    %v95 = vmul.f32 %v94, %v93
    %v96 = vmul.f32 0.5, %v95
    %v97 = vsub.f32 1.5, %v96
    %v98 = vmul.f32 %v93, %v97
    %vm99 = vweird.f32 %v80
    %vm100 = vweird.f32 %v93
    %vm101 = vmor %vm99, %vm100
    %v102 = vsel %vm101, %v93, %v98
    %v103 = vrsqrt.pop %v81
    %v104 = vmul.f32 %v103, %v81
    %v105 = vmul.f32 %v104, %v103
    %v106 = vmul.f32 0.5, %v105
    %v107 = vsub.f32 1.5, %v106
    %v108 = vmul.f32 %v103, %v107
    %vm109 = vweird.f32 %v81
    %vm110 = vweird.f32 %v103
    %vm111 = vmor %vm109, %vm110
    %v112 = vsel %vm111, %v103, %v108
    %v113 = vrsqrt.pop %v82
    %v114 = vmul.f32 %v113, %v82
    %v115 = vmul.f32 %v114, %v113
    %v116 = vmul.f32 0.5, %v115
    %v117 = vsub.f32 1.5, %v116
    %v118 = vmul.f32 %v113, %v117
    %vm119 = vweird.f32 %v82
    %vm120 = vweird.f32 %v113
    %vm121 = vmor %vm119, %vm120
    %v122 = vsel %vm121, %v113, %v118
    %v123 = vsub.f32 %v39, %v51
    %v124 = vsub.f32 %v40, %v52
    %v125 = vsub.f32 %v41, %v53
    %v126 = vsub.f32 %v42, %v54
    %v127 = vmul.f32 %v123, %v92
    %v128 = vmul.f32 %v124, %v102
    %v129 = vmul.f32 %v125, %v112
    %v130 = vmul.f32 %v126, %v122
    %v131 = vld [vmem:[%s1] sm:$0x1]
    %v133 = vperm.slane %v131, 0
    %v135 = vmul.f32 %v127, %v133
    %v136 = vmul.f32 %v128, %v133
    %v137 = vmul.f32 %v129, %v133
    %v138 = vmul.f32 %v130, %v133
    %v139 = vld [vmem:[%s2] sm:$0x1]
    %v141 = vperm.slane %v139, 0
    %v143 = vadd.f32 %v135, %v141
    %v144 = vadd.f32 %v136, %v141
    %v145 = vadd.f32 %v137, %v141
    %v146 = vadd.f32 %v138, %v141
    %v147 = vld [vmem:[%s3] sm:$0xff]
    %v148 = vld [vmem:[%s3 + $0x8] sm:$0xff]
    %v149 = vld [vmem:[%s3 + $0x10] sm:$0xff]
    %v150 = vld [vmem:[%s3 + $0x18] sm:$0xff]
    %v151 = vld [vmem:[%s3 + $0x20] sm:$0xff]
    %v152 = vld [vmem:[%s3 + $0x28] sm:$0xff]
    %v153 = vld [vmem:[%s3 + $0x30] sm:$0xff]
    %v154 = vld [vmem:[%s3 + $0x38] sm:$0xff]
    %v155 = vld [vmem:[%s3 + $0x40] sm:$0xff]
    %v156 = vld [vmem:[%s3 + $0x48] sm:$0xff]
    %v157 = vld [vmem:[%s3 + $0x50] sm:$0xff]
    %v158 = vld [vmem:[%s3 + $0x58] sm:$0xff]
    %v159 = vld [vmem:[%s3 + $0x60] sm:$0xff]
    %v160 = vld [vmem:[%s3 + $0x68] sm:$0xff]
    %v161 = vld [vmem:[%s3 + $0x70] sm:$0xff]
    %v162 = vld [vmem:[%s3 + $0x78] sm:$0xff]
    %v163 = vld [vmem:[%s3 + $0x80] sm:$0xff]
    %v164 = vld [vmem:[%s3 + $0x88] sm:$0xff]
    %v165 = vld [vmem:[%s3 + $0x90] sm:$0xff]
    %v166 = vld [vmem:[%s3 + $0x98] sm:$0xff]
    %v167 = vld [vmem:[%s3 + $0xa0] sm:$0xff]
    %v168 = vld [vmem:[%s3 + $0xa8] sm:$0xff]
    %v169 = vld [vmem:[%s3 + $0xb0] sm:$0xff]
    %v170 = vld [vmem:[%s3 + $0xb8] sm:$0xff]
    %v171 = vld [vmem:[%s3 + $0xc0] sm:$0xff]
    %v172 = vld [vmem:[%s3 + $0xc8] sm:$0xff]
    %v173 = vld [vmem:[%s3 + $0xd0] sm:$0xff]
    %v174 = vld [vmem:[%s3 + $0xd8] sm:$0xff]
    %v175 = vld [vmem:[%s3 + $0xe0] sm:$0xff]
    %v176 = vld [vmem:[%s3 + $0xe8] sm:$0xff]
    %v177 = vld [vmem:[%s3 + $0xf0] sm:$0xff]
    %v178 = vld [vmem:[%s3 + $0xf8] sm:$0xff]
    %v179 = vld [vmem:[%s4] sm:$0x3]
    %v181 = vperm.slane %v179, 0
    %v182 = vperm.slane %v179, 1
    %185 = vmatpush.msra.mxu0 %v177
    %186 = vmatpush.msra.mxu0 %v175
    %187 = vmatpush.msra.mxu0 %v173
    %188 = vmatpush.msra.mxu0 %v171
    %189 = vmatpush.msra.mxu0 %v169
    %190 = vmatpush.msra.mxu0 %v167
    %191 = vmatpush.msra.mxu0 %v165
    %192 = vmatpush.msra.mxu0 %v163
    %193 = vmatpush.msra.mxu0 %v161
    %194 = vmatpush.msra.mxu0 %v159
    %195 = vmatpush.msra.mxu0 %v157
    %196 = vmatpush.msra.mxu0 %v155
    %197 = vmatpush.msra.mxu0 %v153
    %198 = vmatpush.msra.mxu0 %v151
    %199 = vmatpush.msra.mxu0 %v149
    %200 = vmatpush.msra.mxu0 %v147
    %201 = vmatmul.f32.gmra.mxu0 %v143
    %v202 = vpop.f32.mrf.mxu0
    %v203 = vadd.f32 %v181, %v202
    %204 = vmatmul.f32.gmra.mxu0 %v144
    %v205 = vpop.f32.mrf.mxu0
    %v206 = vadd.f32 %v181, %v205
    %207 = vmatmul.f32.gmra.mxu0 %v145
    %v208 = vpop.f32.mrf.mxu0
    %v209 = vadd.f32 %v181, %v208
    %210 = vmatmul.f32.gmra.mxu0 %v146
    %v211 = vpop.f32.mrf.mxu0
    %v212 = vadd.f32 %v181, %v211
    %213 = vdwg.mxu0
    %214 = vmatpush.msra.mxu0 %v178
    %215 = vmatpush.msra.mxu0 %v176
    %216 = vmatpush.msra.mxu0 %v174
    %217 = vmatpush.msra.mxu0 %v172
    %218 = vmatpush.msra.mxu0 %v170
    %219 = vmatpush.msra.mxu0 %v168
    %220 = vmatpush.msra.mxu0 %v166
    %221 = vmatpush.msra.mxu0 %v164
    %222 = vmatpush.msra.mxu0 %v162
    %223 = vmatpush.msra.mxu0 %v160
    %224 = vmatpush.msra.mxu0 %v158
    %225 = vmatpush.msra.mxu0 %v156
    %226 = vmatpush.msra.mxu0 %v154
    %227 = vmatpush.msra.mxu0 %v152
    %228 = vmatpush.msra.mxu0 %v150
    %229 = vmatpush.msra.mxu0 %v148
    %230 = vmatmul.f32.gmra.mxu0 %v143
    %v231 = vpop.f32.mrf.mxu0
    %v232 = vadd.f32 %v182, %v231
    %233 = vmatmul.f32.gmra.mxu0 %v144
    %v234 = vpop.f32.mrf.mxu0
    %v235 = vadd.f32 %v182, %v234
    %236 = vmatmul.f32.gmra.mxu0 %v145
    %v237 = vpop.f32.mrf.mxu0
    %v238 = vadd.f32 %v182, %v237
    %239 = vmatmul.f32.gmra.mxu0 %v146
    %v240 = vpop.f32.mrf.mxu0
    %v241 = vadd.f32 %v182, %v240
    %242 = vdwg.mxu0
    %v243 = vmul.f32 %v203, 0.5
    %v244 = vmul.f32 %v232, 0.5
    %v245 = vmul.f32 %v206, 0.5
    %v246 = vmul.f32 %v235, 0.5
    %v247 = vmul.f32 %v209, 0.5
    %v248 = vmul.f32 %v238, 0.5
    %v249 = vmul.f32 %v212, 0.5
    %v250 = vmul.f32 %v241, 0.5
    %v251 = vmul.f32 %v203, %v203
    %v252 = vmul.f32 %v232, %v232
    %v253 = vmul.f32 %v206, %v206
    %v254 = vmul.f32 %v235, %v235
    %v255 = vmul.f32 %v209, %v209
    %v256 = vmul.f32 %v238, %v238
    %v257 = vmul.f32 %v212, %v212
    %v258 = vmul.f32 %v241, %v241
    %v259 = vmul.f32 %v251, %v203
    %v260 = vmul.f32 %v252, %v232
    %v261 = vmul.f32 %v253, %v206
    %v262 = vmul.f32 %v254, %v235
    %v263 = vmul.f32 %v255, %v209
    %v264 = vmul.f32 %v256, %v238
    %v265 = vmul.f32 %v257, %v212
    %v266 = vmul.f32 %v258, %v241
    %v267 = vmul.f32 %v259, 0.044715
    %v268 = vmul.f32 %v260, 0.044715
    %v269 = vmul.f32 %v261, 0.044715
    %v270 = vmul.f32 %v262, 0.044715
    %v271 = vmul.f32 %v263, 0.044715
    %v272 = vmul.f32 %v264, 0.044715
    %v273 = vmul.f32 %v265, 0.044715
    %v274 = vmul.f32 %v266, 0.044715
    %v275 = vadd.f32 %v203, %v267
    %v276 = vadd.f32 %v232, %v268
    %v277 = vadd.f32 %v206, %v269
    %v278 = vadd.f32 %v235, %v270
    %v279 = vadd.f32 %v209, %v271
    %v280 = vadd.f32 %v238, %v272
    %v281 = vadd.f32 %v212, %v273
    %v282 = vadd.f32 %v241, %v274
    %v283 = vmul.f32 %v275, 0.7978846
    %v284 = vmul.f32 %v276, 0.7978846
    %v285 = vmul.f32 %v277, 0.7978846
    %v286 = vmul.f32 %v278, 0.7978846
    %v287 = vmul.f32 %v279, 0.7978846
    %v288 = vmul.f32 %v280, 0.7978846
    %v289 = vmul.f32 %v281, 0.7978846
    %v290 = vmul.f32 %v282, 0.7978846
    %v291 = vtanh.pop %v283
    %v292 = vtanh.pop %v284
    %v293 = vtanh.pop %v285
    %v294 = vtanh.pop %v286
    %v295 = vtanh.pop %v287
    %v296 = vtanh.pop %v288
    %v297 = vtanh.pop %v289
    %v298 = vtanh.pop %v290
    %v299 = vadd.f32 %v291, 1.0
    %v300 = vadd.f32 %v292, 1.0
    %v301 = vadd.f32 %v293, 1.0
    %v302 = vadd.f32 %v294, 1.0
    %v303 = vadd.f32 %v295, 1.0
    %v304 = vadd.f32 %v296, 1.0
    %v305 = vadd.f32 %v297, 1.0
    %v306 = vadd.f32 %v298, 1.0
    %v307 = vmul.f32 %v243, %v299
    %v308 = vmul.f32 %v244, %v300
    %v309 = vmul.f32 %v245, %v301
    %v310 = vmul.f32 %v246, %v302
    %v311 = vmul.f32 %v247, %v303
    %v312 = vmul.f32 %v248, %v304
    %v313 = vmul.f32 %v249, %v305
    %v314 = vmul.f32 %v250, %v306
    %v315 = vld [vmem:[%s5] sm:$0xff]
    %v316 = vld [vmem:[%s5 + $0x8] sm:$0xff]
    %v317 = vld [vmem:[%s5 + $0x10] sm:$0xff]
    %v318 = vld [vmem:[%s5 + $0x18] sm:$0xff]
    %v319 = vld [vmem:[%s5 + $0x20] sm:$0xff]
    %v320 = vld [vmem:[%s5 + $0x28] sm:$0xff]
    %v321 = vld [vmem:[%s5 + $0x30] sm:$0xff]
    %v322 = vld [vmem:[%s5 + $0x38] sm:$0xff]
    %v323 = vld [vmem:[%s5 + $0x40] sm:$0xff]
    %v324 = vld [vmem:[%s5 + $0x48] sm:$0xff]
    %v325 = vld [vmem:[%s5 + $0x50] sm:$0xff]
    %v326 = vld [vmem:[%s5 + $0x58] sm:$0xff]
    %v327 = vld [vmem:[%s5 + $0x60] sm:$0xff]
    %v328 = vld [vmem:[%s5 + $0x68] sm:$0xff]
    %v329 = vld [vmem:[%s5 + $0x70] sm:$0xff]
    %v330 = vld [vmem:[%s5 + $0x78] sm:$0xff]
    %v331 = vld [vmem:[%s5 + $0x80] sm:$0xff]
    %v332 = vld [vmem:[%s5 + $0x88] sm:$0xff]
    %v333 = vld [vmem:[%s5 + $0x90] sm:$0xff]
    %v334 = vld [vmem:[%s5 + $0x98] sm:$0xff]
    %v335 = vld [vmem:[%s5 + $0xa0] sm:$0xff]
    %v336 = vld [vmem:[%s5 + $0xa8] sm:$0xff]
    %v337 = vld [vmem:[%s5 + $0xb0] sm:$0xff]
    %v338 = vld [vmem:[%s5 + $0xb8] sm:$0xff]
    %v339 = vld [vmem:[%s5 + $0xc0] sm:$0xff]
    %v340 = vld [vmem:[%s5 + $0xc8] sm:$0xff]
    %v341 = vld [vmem:[%s5 + $0xd0] sm:$0xff]
    %v342 = vld [vmem:[%s5 + $0xd8] sm:$0xff]
    %v343 = vld [vmem:[%s5 + $0xe0] sm:$0xff]
    %v344 = vld [vmem:[%s5 + $0xe8] sm:$0xff]
    %v345 = vld [vmem:[%s5 + $0xf0] sm:$0xff]
    %v346 = vld [vmem:[%s5 + $0xf8] sm:$0xff]
    %v347 = vld [vmem:[%s6] sm:$0x1]
    %v349 = vperm.slane %v347, 0
    %351 = vmatpush.msra.mxu0 %v330
    %352 = vmatpush.msra.mxu0 %v329
    %353 = vmatpush.msra.mxu0 %v328
    %354 = vmatpush.msra.mxu0 %v327
    %355 = vmatpush.msra.mxu0 %v326
    %356 = vmatpush.msra.mxu0 %v325
    %357 = vmatpush.msra.mxu0 %v324
    %358 = vmatpush.msra.mxu0 %v323
    %359 = vmatpush.msra.mxu0 %v322
    %360 = vmatpush.msra.mxu0 %v321
    %361 = vmatpush.msra.mxu0 %v320
    %362 = vmatpush.msra.mxu0 %v319
    %363 = vmatpush.msra.mxu0 %v318
    %364 = vmatpush.msra.mxu0 %v317
    %365 = vmatpush.msra.mxu0 %v316
    %366 = vmatpush.msra.mxu0 %v315
    %367 = vmatmul.f32.gmra.mxu0 %v307
    %v368 = vpop.f32.mrf.mxu0
    %v369 = vadd.f32 %v349, %v368
    %370 = vmatmul.f32.gmra.mxu0 %v309
    %v371 = vpop.f32.mrf.mxu0
    %v372 = vadd.f32 %v349, %v371
    %373 = vmatmul.f32.gmra.mxu0 %v311
    %v374 = vpop.f32.mrf.mxu0
    %v375 = vadd.f32 %v349, %v374
    %376 = vmatmul.f32.gmra.mxu0 %v313
    %v377 = vpop.f32.mrf.mxu0
    %v378 = vadd.f32 %v349, %v377
    %379 = vdwg.mxu0
    %380 = vmatpush.msra.mxu0 %v346
    %381 = vmatpush.msra.mxu0 %v345
    %382 = vmatpush.msra.mxu0 %v344
    %383 = vmatpush.msra.mxu0 %v343
    %384 = vmatpush.msra.mxu0 %v342
    %385 = vmatpush.msra.mxu0 %v341
    %386 = vmatpush.msra.mxu0 %v340
    %387 = vmatpush.msra.mxu0 %v339
    %388 = vmatpush.msra.mxu0 %v338
    %389 = vmatpush.msra.mxu0 %v337
    %390 = vmatpush.msra.mxu0 %v336
    %391 = vmatpush.msra.mxu0 %v335
    %392 = vmatpush.msra.mxu0 %v334
    %393 = vmatpush.msra.mxu0 %v333
    %394 = vmatpush.msra.mxu0 %v332
    %395 = vmatpush.msra.mxu0 %v331
    %396 = vmatmul.f32.gmra.mxu0 %v308
    %v397 = vpop.f32.mrf.mxu0
    %v398 = vadd.f32 %v369, %v397
    %399 = vmatmul.f32.gmra.mxu0 %v310
    %v400 = vpop.f32.mrf.mxu0
    %v401 = vadd.f32 %v372, %v400
    %402 = vmatmul.f32.gmra.mxu0 %v312
    %v403 = vpop.f32.mrf.mxu0
    %v404 = vadd.f32 %v375, %v403
    %405 = vmatmul.f32.gmra.mxu0 %v314
    %v406 = vpop.f32.mrf.mxu0
    %v407 = vadd.f32 %v378, %v406
    %408 = vdwg.mxu0
    %v409 = vld [vmem:[%s7] sm:$0xff]
    %v410 = vld [vmem:[%s7 + $0x8] sm:$0xff]
    %v411 = vld [vmem:[%s7 + $0x10] sm:$0xff]
    %v412 = vld [vmem:[%s7 + $0x18] sm:$0xff]
    %v413 = vld [vmem:[%s7 + $0x20] sm:$0xff]
    %v414 = vld [vmem:[%s7 + $0x28] sm:$0xff]
    %v415 = vld [vmem:[%s7 + $0x30] sm:$0xff]
    %v416 = vld [vmem:[%s7 + $0x38] sm:$0xff]
    %v417 = vld [vmem:[%s7 + $0x40] sm:$0xff]
    %v418 = vld [vmem:[%s7 + $0x48] sm:$0xff]
    %v419 = vld [vmem:[%s7 + $0x50] sm:$0xff]
    %v420 = vld [vmem:[%s7 + $0x58] sm:$0xff]
    %v421 = vld [vmem:[%s7 + $0x60] sm:$0xff]
    %v422 = vld [vmem:[%s7 + $0x68] sm:$0xff]
    %v423 = vld [vmem:[%s7 + $0x70] sm:$0xff]
    %v424 = vld [vmem:[%s7 + $0x78] sm:$0xff]
    %v425 = vld [vmem:[%s8] sm:$0x1]
    %v427 = vperm.slane %v425, 0
    %429 = vmatpush.msra.mxu0 %v424
    %430 = vmatpush.msra.mxu0 %v423
    %431 = vmatpush.msra.mxu0 %v422
    %432 = vmatpush.msra.mxu0 %v421
    %433 = vmatpush.msra.mxu0 %v420
    %434 = vmatpush.msra.mxu0 %v419
    %435 = vmatpush.msra.mxu0 %v418
    %436 = vmatpush.msra.mxu0 %v417
    %437 = vmatpush.msra.mxu0 %v416
    %438 = vmatpush.msra.mxu0 %v415
    %439 = vmatpush.msra.mxu0 %v414
    %440 = vmatpush.msra.mxu0 %v413
    %441 = vmatpush.msra.mxu0 %v412
    %442 = vmatpush.msra.mxu0 %v411
    %443 = vmatpush.msra.mxu0 %v410
    %444 = vmatpush.msra.mxu0 %v409
    %445 = vmatmul.f32.gmra.mxu0 %v143
    %v446 = vpop.f32.mrf.mxu0
    %v447 = vadd.f32 %v427, %v446
    %448 = vmatmul.f32.gmra.mxu0 %v144
    %v449 = vpop.f32.mrf.mxu0
    %v450 = vadd.f32 %v427, %v449
    %451 = vmatmul.f32.gmra.mxu0 %v145
    %v452 = vpop.f32.mrf.mxu0
    %v453 = vadd.f32 %v427, %v452
    %454 = vmatmul.f32.gmra.mxu0 %v146
    %v455 = vpop.f32.mrf.mxu0
    %v456 = vadd.f32 %v427, %v455
    %457 = vdwg.mxu0
    %v458 = vmax.f32 %v447, 0.0
    %v459 = vmax.f32 %v450, 0.0
    %v460 = vmax.f32 %v453, 0.0
    %v461 = vmax.f32 %v456, 0.0
    %v462 = vld [vmem:[%s9] sm:$0xff]
    %v463 = vld [vmem:[%s9 + $0x8] sm:$0xff]
    %v464 = vld [vmem:[%s9 + $0x10] sm:$0xff]
    %v465 = vld [vmem:[%s9 + $0x18] sm:$0xff]
    %v466 = vld [vmem:[%s9 + $0x20] sm:$0xff]
    %v467 = vld [vmem:[%s9 + $0x28] sm:$0xff]
    %v468 = vld [vmem:[%s9 + $0x30] sm:$0xff]
    %v469 = vld [vmem:[%s9 + $0x38] sm:$0xff]
    %v470 = vld [vmem:[%s9 + $0x40] sm:$0xff]
    %v471 = vld [vmem:[%s9 + $0x48] sm:$0xff]
    %v472 = vld [vmem:[%s9 + $0x50] sm:$0xff]
    %v473 = vld [vmem:[%s9 + $0x58] sm:$0xff]
    %v474 = vld [vmem:[%s9 + $0x60] sm:$0xff]
    %v475 = vld [vmem:[%s9 + $0x68] sm:$0xff]
    %v476 = vld [vmem:[%s9 + $0x70] sm:$0xff]
    %v477 = vld [vmem:[%s9 + $0x78] sm:$0xff]
    %v478 = vld [vmem:[%s10] sm:$0x1]
    %v480 = vperm.slane %v478, 0
    %482 = vmatpush.msra.mxu0 %v477
    %483 = vmatpush.msra.mxu0 %v476
    %484 = vmatpush.msra.mxu0 %v475
    %485 = vmatpush.msra.mxu0 %v474
    %486 = vmatpush.msra.mxu0 %v473
    %487 = vmatpush.msra.mxu0 %v472
    %488 = vmatpush.msra.mxu0 %v471
    %489 = vmatpush.msra.mxu0 %v470
    %490 = vmatpush.msra.mxu0 %v469
    %491 = vmatpush.msra.mxu0 %v468
    %492 = vmatpush.msra.mxu0 %v467
    %493 = vmatpush.msra.mxu0 %v466
    %494 = vmatpush.msra.mxu0 %v465
    %495 = vmatpush.msra.mxu0 %v464
    %496 = vmatpush.msra.mxu0 %v463
    %497 = vmatpush.msra.mxu0 %v462
    %498 = vmatmul.f32.gmra.mxu0 %v458
    %v499 = vpop.f32.mrf.mxu0
    %v500 = vadd.f32 %v480, %v499
    %501 = vmatmul.f32.gmra.mxu0 %v459
    %v502 = vpop.f32.mrf.mxu0
    %v503 = vadd.f32 %v480, %v502
    %504 = vmatmul.f32.gmra.mxu0 %v460
    %v505 = vpop.f32.mrf.mxu0
    %v506 = vadd.f32 %v480, %v505
    %507 = vmatmul.f32.gmra.mxu0 %v461
    %v508 = vpop.f32.mrf.mxu0
    %v509 = vadd.f32 %v480, %v508
    %510 = vdwg.mxu0
    %v511 = vadd.f32 %v39, %v398
    %v512 = vadd.f32 %v40, %v401
    %v513 = vadd.f32 %v41, %v404
    %v514 = vadd.f32 %v42, %v407
    %v515 = vmul.f32 %v500, 0.2
    %v516 = vmul.f32 %v503, 0.2
    %v517 = vmul.f32 %v506, 0.2
    %v518 = vmul.f32 %v509, 0.2
    %v519 = vadd.f32 %v511, %v515
    %v520 = vadd.f32 %v512, %v516
    %v521 = vadd.f32 %v513, %v517
    %v522 = vadd.f32 %v514, %v518
    %523 = vst [vmem:[#allocation2] sm:$0xff] %v519
    %524 = vst [vmem:[#allocation2 + $0x8] sm:$0xff] %v520
    %525 = vst [vmem:[#allocation2 + $0x10] sm:$0xff] %v521
    %526 = vst [vmem:[#allocation2 + $0x18] sm:$0xff] %v522
    // Predicated region
    $region46: #{block_forward.7} parent=1 // pred_check
      _
    $region47: #{block_forward.7} parent=1 // pred_check_branch
      %528 = sbr.rel (0) target = $region49
    $region48: #{block_forward.7} parent=1 // pred_region
      %530 = vsyncadd [#allocation3], 0
      %s531 = sshll.u32 [#allocation2], 4
      %s532 = int_to_ptr.vmem [resolvable:$true] %s531
      %s533 = sshll.u32 %s11, 4
      %s534 = int_to_ptr.hbm [resolvable:$true] %s533
      %539 = dma.vmem_to_hbm [thread:$0]  %s532, 512, %s534, [#allocation3], 128, 128, 8
    $region49: #{block_forward.7} parent=1 // pred_fallthru
      _
    // Predicated region
    $region50: #{block_forward.7} parent=1 // pred_check
      _
    $region51: #{block_forward.7} parent=1 // pred_check_branch
      %541 = sbr.rel (0) target = $region53
    $region52: #{block_forward.7} parent=1 // pred_region
      %543 = dma.done [#allocation3], 512
    $region53: #{block_forward.7} parent=1 // pred_fallthru
      _
    %544 = vsyncpa [#allocation3], 1

</llo_original>
